<compile_context>
chip_gen: v6e
topology: v6e:2x2x1
jax: 0.10.0
libtpu: 0.0.40
codegen_flags: <defaults>
</compile_context>

<pallas_src>
import numpy as np
import jax
import jax.numpy as jnp
from jax.experimental import pallas as pl
from jax.experimental.pallas import tpu as pltpu

EPS = 1e-5  # PyTorch InstanceNorm default eps


def residual_block_kernel(xpad_ref, w1_ref, w2_ref, sred_ref, sbc_ref,
                          vecs_ref, out_ref):
    # xpad_ref : (Nb, H+2, (W+2)*Cin)   reflect-padded input, minor dims flattened
    # w1_ref   : (3, (W+2)*Cin, 2*W*Cout)  banded conv1 RHS per dy tap;
    #            lanes [0:W*Cout] = conv1, lanes [W*Cout:] = 1x1 shortcut (dy=1)
    # w2_ref   : (3, (W+2)*Cout, W*Cout)   banded conv2 RHS per dy tap
    # sred_ref : (W*Cout, Cout)  0/1: reduce lane-dense row to per-channel sums
    # sbc_ref  : (Cout, W*Cout)  0/1: broadcast per-channel scalars back to lanes
    # vecs_ref : (6, Cout)       packed [g0, be0, g1, be1, g2, be2]
    # out_ref  : (Nb, H, W*Cout) lane-dense output
    Nb, Hp, _ = xpad_ref.shape
    H = Hp - 2
    WCout = out_ref.shape[-1]
    Cout = sred_ref.shape[-1]
    W = WCout // Cout
    NH = Nb * H
    inv_hw = 1.0 / (H * W)

    vecs = vecs_ref[...]
    g0, be0 = vecs[0:1], vecs[1:2]
    g1, be1 = vecs[2:3], vecs[3:4]
    g2, be2 = vecs[4:5], vecs[5:6]
    sred = sred_ref[...]                           # (W*Cout, Cout)
    sbc = sbc_ref[...]                             # (Cout, W*Cout)

    def band_conv(src, rhs_ref):
        # src: (Nb, H+2, L). Returns sum_dy src[:, dy:dy+H, :] @ rhs_ref[dy].
        L = src.shape[-1]
        acc = None
        for dy in range(3):                        # static unroll
            lhs = src[:, dy:dy + H, :].reshape(NH, L)
            part = jnp.dot(lhs, rhs_ref[dy],
                           preferred_element_type=jnp.float32)
            acc = part if acc is None else acc + part
        return acc

    def inorm(z, g, beta):
        # z: (Nb, H, W*Cout). Per-sample, per-channel stats over H*W (biased).
        zs = jnp.sum(z, axis=1)                    # (Nb, W*Cout) sublane reduce
        zss = jnp.sum(z * z, axis=1)               # (Nb, W*Cout)
        s1 = jnp.dot(zs, sred, preferred_element_type=jnp.float32)   # (Nb, Cout)
        s2 = jnp.dot(zss, sred, preferred_element_type=jnp.float32)  # (Nb, Cout)
        mu = s1 * inv_hw
        var = s2 * inv_hw - mu * mu
        a = jax.lax.rsqrt(var + EPS) * g           # (Nb, Cout)
        b = beta - mu * a
        a_b = jnp.dot(a, sbc, preferred_element_type=jnp.float32)    # (Nb, W*Cout)
        b_b = jnp.dot(b, sbc, preferred_element_type=jnp.float32)
        return z * a_b[:, None, :] + b_b[:, None, :]

    xpad = xpad_ref[...]                           # (Nb, H+2, (W+2)*Cin)

    # ---- conv1 + fused 1x1 shortcut (3 banded MXU dots) -------------------
    acc1 = band_conv(xpad, w1_ref)                 # (NH, 2*W*Cout)
    a1 = acc1[:, :WCout].reshape(Nb, H, WCout)     # conv1 pre-norm
    sc = acc1[:, WCout:].reshape(Nb, H, WCout)     # shortcut pre-norm

    o1 = jnp.maximum(inorm(a1, g1, be1), 0.0)      # (Nb, H, W*Cout)

    # ---- reflect-pad o1 directly in the lane-dense layout ------------------
    o1f = o1.reshape(NH, WCout)
    left = o1f[:, Cout:2 * Cout]                   # column w = 1
    right = o1f[:, (W - 2) * Cout:(W - 1) * Cout]  # column w = W-2
    o1w = jnp.concatenate([left, o1f, right], axis=-1)          # (NH,(W+2)*Cout)
    o1w = o1w.reshape(Nb, H, (W + 2) * Cout)
    o1p = jnp.concatenate([o1w[:, 1:2], o1w, o1w[:, H - 2:H - 1]],
                          axis=1)                  # (Nb, H+2, (W+2)*Cout)

    # ---- conv2 (3 banded MXU dots) + norm2 ---------------------------------
    a2 = band_conv(o1p, w2_ref).reshape(Nb, H, WCout)
    o2 = inorm(a2, g2, be2)

    # ---- shortcut norm + residual add + relu, lane-dense store -------------
    sc = inorm(sc, g0, be0)
    out_ref[...] = jnp.maximum(o2 + sc, 0.0).astype(out_ref.dtype)


def _banded_conv_rhs(w_kkio, W):
    """(3,3,Ci,Co) kernel -> (3, (W+2)*Ci, W*Co) banded RHS, one slab per dy."""
    _, _, Ci, Co = w_kkio.shape
    x = np.arange(W + 2)[:, None, None]
    dx = np.arange(3)[None, :, None]
    w = np.arange(W)[None, None, :]
    sel = jnp.asarray((x == w + dx).astype(np.float32))          # (W+2, 3, W)
    b = jnp.einsum("xdw,ydio->yxiwo", sel, w_kkio)               # (3,W+2,Ci,W,Co)
    return b.reshape(3, (W + 2) * Ci, W * Co)


def _shortcut_rhs(wsc, W):
    """(Ci,Co) 1x1 weight -> ((W+2)*Ci, W*Co) center-tap (dx=1) band."""
    Ci, Co = wsc.shape
    x = np.arange(W + 2)[:, None]
    w = np.arange(W)[None, :]
    sel = jnp.asarray((x == w + 1).astype(np.float32))           # (W+2, W)
    c = jnp.einsum("xw,io->xiwo", sel, wsc)
    return c.reshape((W + 2) * Ci, W * Co)


def residual_block_forward(x_nchw, p, *, block_n=None):
    """x_nchw: (N, Cin, H, W) float32, params dict p. Returns (N, Cout, H, W)."""
    N, Cin, H, W = x_nchw.shape
    Cout = p["w1"].shape[-1]

    # Glue: NCHW -> NHWC, reflect pad by 1, flatten the (W+2, Cin) minor dims
    # so the kernel input tile is lane-dense (72 useful lanes, not 4/128).
    x = jnp.transpose(x_nchw, (0, 2, 3, 1))
    xpad = jnp.pad(x, ((0, 0), (1, 1), (1, 1), (0, 0)), mode="reflect")
    xpad = xpad.reshape(N, H + 2, (W + 2) * Cin)

    # Banded conv RHS matrices.  Conv biases b1/b2/bsc are intentionally NOT
    # used: InstanceNorm subtracts any per-channel constant exactly.
    b1 = _banded_conv_rhs(p["w1"].reshape(3, 3, Cin, Cout), W)       # (3,72,128)
    csc = _shortcut_rhs(p["wsc"], W)                                 # (72,128)
    zero = jnp.zeros_like(csc)
    w1_fused = jnp.concatenate(
        [b1, jnp.stack([zero, csc, zero], axis=0)], axis=-1)         # (3,72,256)
    w2 = _banded_conv_rhs(p["w2"].reshape(3, 3, Cout, Cout), W)      # (3,144,128)

    # Constant 0/1 channel reduce / broadcast matrices + packed affine params.
    sred = jnp.asarray(np.tile(np.eye(Cout, dtype=np.float32), (W, 1)))  # (W*Cout,Cout)
    sbc = sred.T                                                         # (Cout,W*Cout)
    vecs = jnp.concatenate(
        [p["g0"], p["be0"], p["g1"], p["be1"], p["g2"], p["be2"]],
        axis=0)                                                          # (6, Cout)

    # Whole batch in a single invocation by default (latency-bound size).
    # TODO(synk): on v7x with larger batches pass block_n < N so the "parallel"
    # grid can shard samples across the two TensorCores (stats are per-sample).
    if block_n is None or block_n > N:
        block_n = N
    grid_n = N // block_n

    out_flat = pl.pallas_call(
        residual_block_kernel,
        out_shape=jax.ShapeDtypeStruct((N, H, W * Cout), jnp.float32),
        grid_spec=pltpu.PrefetchScalarGridSpec(
            num_scalar_prefetch=0,
            grid=(grid_n,),
            in_specs=[
                pl.BlockSpec((block_n, H + 2, (W + 2) * Cin), lambda i: (i, 0, 0)),
                pl.BlockSpec((3, (W + 2) * Cin, 2 * W * Cout), lambda i: (0, 0, 0)),
                pl.BlockSpec((3, (W + 2) * Cout, W * Cout), lambda i: (0, 0, 0)),
                pl.BlockSpec((W * Cout, Cout), lambda i: (0, 0)),
                pl.BlockSpec((Cout, W * Cout), lambda i: (0, 0)),
                pl.BlockSpec((6, Cout), lambda i: (0, 0)),
            ],
            out_specs=pl.BlockSpec((block_n, H, W * Cout), lambda i: (i, 0, 0)),
        ),
        compiler_params=pltpu.CompilerParams(
            dimension_semantics=("parallel",),
            vmem_limit_bytes=32 * 1024 * 1024,
        ),
    )(xpad, w1_fused, w2, sred, sbc, vecs)

    # Lane-dense (N, H, W*Cout) is the same contiguous memory as NHWC.
    out = out_flat.reshape(N, H, W, Cout)
    return jnp.transpose(out, (0, 3, 1, 2))  # back to NCHW


def ref_forward(x_nchw, p):
    """Pure-JAX reference of ResidualBlock.forward (change_dimension=True)."""
    x = jnp.transpose(x_nchw, (0, 2, 3, 1))  # NHWC

    def conv3x3(inp, w9, b):
        hwio = w9.reshape(3, 3, w9.shape[1], w9.shape[2])
        ip = jnp.pad(inp, ((0, 0), (1, 1), (1, 1), (0, 0)), mode="reflect")
        y = jax.lax.conv_general_dilated(
            ip, hwio, (1, 1), "VALID",
            dimension_numbers=("NHWC", "HWIO", "NHWC"))
        return y + b[0]

    def inorm(z, g, bt):
        mu = jnp.mean(z, axis=(1, 2), keepdims=True)
        var = jnp.mean((z - mu) ** 2, axis=(1, 2), keepdims=True)
        return (z - mu) / jnp.sqrt(var + EPS) * g[0] + bt[0]

    o1 = jax.nn.relu(inorm(conv3x3(x, p["w1"], p["b1"]), p["g1"], p["be1"]))
    o2 = inorm(conv3x3(o1, p["w2"], p["b2"]), p["g2"], p["be2"])
    sc = inorm(jnp.einsum("nhwc,cd->nhwd", x, p["wsc"]) + p["bsc"][0],
               p["g0"], p["be0"])
    return jnp.transpose(jax.nn.relu(o2 + sc), (0, 3, 1, 2))


def init_params(key, cin, cout):
    ks = jax.random.split(key, 13)
    s = 0.1
    return {
        "w1": s * jax.random.normal(ks[0], (9, cin, cout), jnp.float32),
        "b1": s * jax.random.normal(ks[1], (1, cout), jnp.float32),
        "w2": s * jax.random.normal(ks[2], (9, cout, cout), jnp.float32),
        "b2": s * jax.random.normal(ks[3], (1, cout), jnp.float32),
        "wsc": s * jax.random.normal(ks[4], (cin, cout), jnp.float32),
        "bsc": s * jax.random.normal(ks[5], (1, cout), jnp.float32),
        "g0": 1.0 + s * jax.random.normal(ks[6], (1, cout), jnp.float32),
        "be0": s * jax.random.normal(ks[7], (1, cout), jnp.float32),
        "g1": 1.0 + s * jax.random.normal(ks[8], (1, cout), jnp.float32),
        "be1": s * jax.random.normal(ks[9], (1, cout), jnp.float32),
        "g2": 1.0 + s * jax.random.normal(ks[10], (1, cout), jnp.float32),
        "be2": s * jax.random.normal(ks[11], (1, cout), jnp.float32),
    }


if __name__ == "__main__":
    key = jax.random.PRNGKey(0)
    kx, kp = jax.random.split(key)

    N, Cin, H, W = 2, 4, 16, 16
    Cout = 8
    x = jax.random.normal(kx, (N, Cin, H, W), jnp.float32)
    params = init_params(kp, Cin, Cout)

    out = jax.block_until_ready(residual_block_forward(x, params))
    ref = jax.block_until_ready(ref_forward(x, params))

    assert out.shape == (N, Cout, H, W)
    assert jnp.allclose(out, ref, atol=1e-3, rtol=1e-3), (
        f"max abs diff = {jnp.max(jnp.abs(out - ref))}")
    print("KERNEL_OK")
</pallas_src>

<mosaic_0001>
module attributes {stable_mosaic.version = 11 : i64} {
  func.func @residual_block_kernel(%arg0: i32, %arg1: memref<2x18x72xf32, #tpu.memory_space<vmem>>, %arg2: memref<3x72x256xf32, #tpu.memory_space<vmem>>, %arg3: memref<3x144x128xf32, #tpu.memory_space<vmem>>, %arg4: memref<128x8xf32, #tpu.memory_space<vmem>>, %arg5: memref<8x128xf32, #tpu.memory_space<vmem>>, %arg6: memref<6x8xf32, #tpu.memory_space<vmem>>, %arg7: memref<2x16x128xf32, #tpu.memory_space<vmem>>) attributes {dimension_semantics = [#tpu.dimension_semantics<parallel>], iteration_bounds = array<i64: 1>, scalar_prefetch = 0 : i64, scratch_operands = 0 : i64, tpu.core_type = #tpu.core_type<tc>, window_params = [{transform_indices = @transform_0, window_bounds = array<i64: 2, 18, 72>}, {pipeline_mode = #tpu.pipeline_mode<synchronous>, transform_indices = @transform_1, window_bounds = array<i64: 3, 72, 256>}, {pipeline_mode = #tpu.pipeline_mode<synchronous>, transform_indices = @transform_2, window_bounds = array<i64: 3, 144, 128>}, {pipeline_mode = #tpu.pipeline_mode<synchronous>, transform_indices = @transform_3, window_bounds = array<i64: 128, 8>}, {pipeline_mode = #tpu.pipeline_mode<synchronous>, transform_indices = @transform_4, window_bounds = array<i64: 8, 128>}, {pipeline_mode = #tpu.pipeline_mode<synchronous>, transform_indices = @transform_5, window_bounds = array<i64: 6, 8>}, {transform_indices = @transform_6, window_bounds = array<i64: 2, 16, 128>}]} {
    %c0 = arith.constant 0 : index
    %c0_0 = arith.constant 0 : index
    %0 = vector.load %arg6[%c0, %c0_0] : memref<6x8xf32, #tpu.memory_space<vmem>>, vector<6x8xf32>
    %1 = vector.extract_strided_slice %0 {offsets = [0, 0], sizes = [1, 8], strides = [1, 1]} : vector<6x8xf32> to vector<1x8xf32>
    %2 = vector.extract_strided_slice %0 {offsets = [1, 0], sizes = [1, 8], strides = [1, 1]} : vector<6x8xf32> to vector<1x8xf32>
    %3 = vector.extract_strided_slice %0 {offsets = [2, 0], sizes = [1, 8], strides = [1, 1]} : vector<6x8xf32> to vector<1x8xf32>
    %4 = vector.extract_strided_slice %0 {offsets = [3, 0], sizes = [1, 8], strides = [1, 1]} : vector<6x8xf32> to vector<1x8xf32>
    %5 = vector.extract_strided_slice %0 {offsets = [4, 0], sizes = [1, 8], strides = [1, 1]} : vector<6x8xf32> to vector<1x8xf32>
    %6 = vector.extract_strided_slice %0 {offsets = [5, 0], sizes = [1, 8], strides = [1, 1]} : vector<6x8xf32> to vector<1x8xf32>
    %c0_1 = arith.constant 0 : index
    %c0_2 = arith.constant 0 : index
    %7 = vector.load %arg4[%c0_1, %c0_2] : memref<128x8xf32, #tpu.memory_space<vmem>>, vector<128x8xf32>
    %c0_3 = arith.constant 0 : index
    %c0_4 = arith.constant 0 : index
    %8 = vector.load %arg5[%c0_3, %c0_4] : memref<8x128xf32, #tpu.memory_space<vmem>>, vector<8x128xf32>
    %c0_5 = arith.constant 0 : index
    %c0_6 = arith.constant 0 : index
    %c0_7 = arith.constant 0 : index
    %9 = vector.load %arg1[%c0_5, %c0_6, %c0_7] : memref<2x18x72xf32, #tpu.memory_space<vmem>>, vector<2x18x72xf32>
    %10 = vector.extract_strided_slice %9 {offsets = [0, 0, 0], sizes = [2, 16, 72], strides = [1, 1, 1]} : vector<2x18x72xf32> to vector<2x16x72xf32>
    %11 = vector.shape_cast %10 : vector<2x16x72xf32> to vector<32x72xf32>
    %c0_8 = arith.constant 0 : index
    %c0_9 = arith.constant 0 : index
    %c0_10 = arith.constant 0 : index
    %12 = vector.load %arg2[%c0_8, %c0_9, %c0_10] : memref<3x72x256xf32, #tpu.memory_space<vmem>>, vector<1x72x256xf32>
    %13 = vector.shape_cast %12 : vector<1x72x256xf32> to vector<72x256xf32>
    %cst = arith.constant dense<0.000000e+00> : vector<32x256xf32>
    %14 = tpu.matmul %11, %13, %cst {dimension_numbers = #tpu.dot_dimension_numbers<[1], [0], [0], [1], [0, 0, 1, 1], [], []>} : vector<32x72xf32>, vector<72x256xf32>, vector<32x256xf32> -> vector<32x256xf32>
    %15 = vector.extract_strided_slice %9 {offsets = [0, 1, 0], sizes = [2, 16, 72], strides = [1, 1, 1]} : vector<2x18x72xf32> to vector<2x16x72xf32>
    %16 = vector.shape_cast %15 : vector<2x16x72xf32> to vector<32x72xf32>
    %c1 = arith.constant 1 : index
    %c0_11 = arith.constant 0 : index
    %c0_12 = arith.constant 0 : index
    %17 = vector.load %arg2[%c1, %c0_11, %c0_12] : memref<3x72x256xf32, #tpu.memory_space<vmem>>, vector<1x72x256xf32>
    %18 = vector.shape_cast %17 : vector<1x72x256xf32> to vector<72x256xf32>
    %cst_13 = arith.constant dense<0.000000e+00> : vector<32x256xf32>
    %19 = tpu.matmul %16, %18, %cst_13 {dimension_numbers = #tpu.dot_dimension_numbers<[1], [0], [0], [1], [0, 0, 1, 1], [], []>} : vector<32x72xf32>, vector<72x256xf32>, vector<32x256xf32> -> vector<32x256xf32>
    %20 = arith.addf %14, %19 : vector<32x256xf32>
    %21 = vector.extract_strided_slice %9 {offsets = [0, 2, 0], sizes = [2, 16, 72], strides = [1, 1, 1]} : vector<2x18x72xf32> to vector<2x16x72xf32>
    %22 = vector.shape_cast %21 : vector<2x16x72xf32> to vector<32x72xf32>
    %c2 = arith.constant 2 : index
    %c0_14 = arith.constant 0 : index
    %c0_15 = arith.constant 0 : index
    %23 = vector.load %arg2[%c2, %c0_14, %c0_15] : memref<3x72x256xf32, #tpu.memory_space<vmem>>, vector<1x72x256xf32>
    %24 = vector.shape_cast %23 : vector<1x72x256xf32> to vector<72x256xf32>
    %cst_16 = arith.constant dense<0.000000e+00> : vector<32x256xf32>
    %25 = tpu.matmul %22, %24, %cst_16 {dimension_numbers = #tpu.dot_dimension_numbers<[1], [0], [0], [1], [0, 0, 1, 1], [], []>} : vector<32x72xf32>, vector<72x256xf32>, vector<32x256xf32> -> vector<32x256xf32>
    %26 = arith.addf %20, %25 : vector<32x256xf32>
    %27 = vector.extract_strided_slice %26 {offsets = [0, 0], sizes = [32, 128], strides = [1, 1]} : vector<32x256xf32> to vector<32x128xf32>
    %28 = vector.shape_cast %27 : vector<32x128xf32> to vector<2x16x128xf32>
    %29 = vector.extract_strided_slice %26 {offsets = [0, 128], sizes = [32, 128], strides = [1, 1]} : vector<32x256xf32> to vector<32x128xf32>
    %30 = vector.shape_cast %29 : vector<32x128xf32> to vector<2x16x128xf32>
    %cst_17 = arith.constant dense<0.000000e+00> : vector<2x128xf32>
    %31 = vector.multi_reduction <add>, %28, %cst_17 [1] : vector<2x16x128xf32> to vector<2x128xf32>
    %32 = arith.mulf %28, %28 : vector<2x16x128xf32>
    %cst_18 = arith.constant dense<0.000000e+00> : vector<2x128xf32>
    %33 = vector.multi_reduction <add>, %32, %cst_18 [1] : vector<2x16x128xf32> to vector<2x128xf32>
    %cst_19 = arith.constant dense<0.000000e+00> : vector<2x8xf32>
    %34 = tpu.matmul %31, %7, %cst_19 {dimension_numbers = #tpu.dot_dimension_numbers<[1], [0], [0], [1], [0, 0, 1, 1], [], []>} : vector<2x128xf32>, vector<128x8xf32>, vector<2x8xf32> -> vector<2x8xf32>
    %cst_20 = arith.constant dense<0.000000e+00> : vector<2x8xf32>
    %35 = tpu.matmul %33, %7, %cst_20 {dimension_numbers = #tpu.dot_dimension_numbers<[1], [0], [0], [1], [0, 0, 1, 1], [], []>} : vector<2x128xf32>, vector<128x8xf32>, vector<2x8xf32> -> vector<2x8xf32>
    %cst_21 = arith.constant 3.906250e-03 : f32
    %36 = vector.broadcast %cst_21 : f32 to vector<2x8xf32>
    %37 = arith.mulf %34, %36 : vector<2x8xf32>
    %cst_22 = arith.constant 3.906250e-03 : f32
    %38 = vector.broadcast %cst_22 : f32 to vector<2x8xf32>
    %39 = arith.mulf %35, %38 : vector<2x8xf32>
    %40 = arith.mulf %37, %37 : vector<2x8xf32>
    %41 = arith.subf %39, %40 : vector<2x8xf32>
    %cst_23 = arith.constant 9.99999974E-6 : f32
    %42 = vector.broadcast %cst_23 : f32 to vector<2x8xf32>
    %43 = arith.addf %41, %42 : vector<2x8xf32>
    %44 = math.rsqrt %43 : vector<2x8xf32>
    %45 = vector.broadcast %3 : vector<1x8xf32> to vector<2x8xf32>
    %46 = arith.mulf %44, %45 : vector<2x8xf32>
    %47 = arith.mulf %37, %46 : vector<2x8xf32>
    %48 = vector.broadcast %4 : vector<1x8xf32> to vector<2x8xf32>
    %49 = arith.subf %48, %47 : vector<2x8xf32>
    %cst_24 = arith.constant dense<0.000000e+00> : vector<2x128xf32>
    %50 = tpu.matmul %46, %8, %cst_24 {dimension_numbers = #tpu.dot_dimension_numbers<[1], [0], [0], [1], [0, 0, 1, 1], [], []>} : vector<2x8xf32>, vector<8x128xf32>, vector<2x128xf32> -> vector<2x128xf32>
    %cst_25 = arith.constant dense<0.000000e+00> : vector<2x128xf32>
    %51 = tpu.matmul %49, %8, %cst_25 {dimension_numbers = #tpu.dot_dimension_numbers<[1], [0], [0], [1], [0, 0, 1, 1], [], []>} : vector<2x8xf32>, vector<8x128xf32>, vector<2x128xf32> -> vector<2x128xf32>
    %52 = vector.shape_cast %50 : vector<2x128xf32> to vector<2x1x128xf32>
    %53 = vector.broadcast %52 : vector<2x1x128xf32> to vector<2x16x128xf32>
    %54 = arith.mulf %28, %53 : vector<2x16x128xf32>
    %55 = vector.shape_cast %51 : vector<2x128xf32> to vector<2x1x128xf32>
    %56 = vector.broadcast %55 : vector<2x1x128xf32> to vector<2x16x128xf32>
    %57 = arith.addf %54, %56 : vector<2x16x128xf32>
    %cst_26 = arith.constant 0.000000e+00 : f32
    %58 = vector.broadcast %cst_26 : f32 to vector<2x16x128xf32>
    %59 = arith.maximumf %57, %58 : vector<2x16x128xf32>
    %60 = vector.shape_cast %59 : vector<2x16x128xf32> to vector<32x128xf32>
    %61 = vector.extract_strided_slice %60 {offsets = [0, 8], sizes = [32, 8], strides = [1, 1]} : vector<32x128xf32> to vector<32x8xf32>
    %62 = vector.extract_strided_slice %60 {offsets = [0, 112], sizes = [32, 8], strides = [1, 1]} : vector<32x128xf32> to vector<32x8xf32>
    %63 = tpu.concatenate %61, %60, %62 in 1 : vector<32x8xf32>, vector<32x128xf32>, vector<32x8xf32> -> vector<32x144xf32>
    %64 = vector.shape_cast %63 : vector<32x144xf32> to vector<2x16x144xf32>
    %65 = vector.extract_strided_slice %64 {offsets = [0, 1, 0], sizes = [2, 1, 144], strides = [1, 1, 1]} : vector<2x16x144xf32> to vector<2x1x144xf32>
    %66 = vector.extract_strided_slice %64 {offsets = [0, 14, 0], sizes = [2, 1, 144], strides = [1, 1, 1]} : vector<2x16x144xf32> to vector<2x1x144xf32>
    %67 = tpu.concatenate %65, %64, %66 in 1 : vector<2x1x144xf32>, vector<2x16x144xf32>, vector<2x1x144xf32> -> vector<2x18x144xf32>
    %68 = vector.extract_strided_slice %67 {offsets = [0, 0, 0], sizes = [2, 16, 144], strides = [1, 1, 1]} : vector<2x18x144xf32> to vector<2x16x144xf32>
    %69 = vector.shape_cast %68 : vector<2x16x144xf32> to vector<32x144xf32>
    %c0_27 = arith.constant 0 : index
    %c0_28 = arith.constant 0 : index
    %c0_29 = arith.constant 0 : index
    %70 = vector.load %arg3[%c0_27, %c0_28, %c0_29] : memref<3x144x128xf32, #tpu.memory_space<vmem>>, vector<1x144x128xf32>
    %71 = vector.shape_cast %70 : vector<1x144x128xf32> to vector<144x128xf32>
    %cst_30 = arith.constant dense<0.000000e+00> : vector<32x128xf32>
    %72 = tpu.matmul %69, %71, %cst_30 {dimension_numbers = #tpu.dot_dimension_numbers<[1], [0], [0], [1], [0, 0, 1, 1], [], []>} : vector<32x144xf32>, vector<144x128xf32>, vector<32x128xf32> -> vector<32x128xf32>
    %73 = vector.extract_strided_slice %67 {offsets = [0, 1, 0], sizes = [2, 16, 144], strides = [1, 1, 1]} : vector<2x18x144xf32> to vector<2x16x144xf32>
    %74 = vector.shape_cast %73 : vector<2x16x144xf32> to vector<32x144xf32>
    %c1_31 = arith.constant 1 : index
    %c0_32 = arith.constant 0 : index
    %c0_33 = arith.constant 0 : index
    %75 = vector.load %arg3[%c1_31, %c0_32, %c0_33] : memref<3x144x128xf32, #tpu.memory_space<vmem>>, vector<1x144x128xf32>
    %76 = vector.shape_cast %75 : vector<1x144x128xf32> to vector<144x128xf32>
    %cst_34 = arith.constant dense<0.000000e+00> : vector<32x128xf32>
    %77 = tpu.matmul %74, %76, %cst_34 {dimension_numbers = #tpu.dot_dimension_numbers<[1], [0], [0], [1], [0, 0, 1, 1], [], []>} : vector<32x144xf32>, vector<144x128xf32>, vector<32x128xf32> -> vector<32x128xf32>
    %78 = arith.addf %72, %77 : vector<32x128xf32>
    %79 = vector.extract_strided_slice %67 {offsets = [0, 2, 0], sizes = [2, 16, 144], strides = [1, 1, 1]} : vector<2x18x144xf32> to vector<2x16x144xf32>
    %80 = vector.shape_cast %79 : vector<2x16x144xf32> to vector<32x144xf32>
    %c2_35 = arith.constant 2 : index
    %c0_36 = arith.constant 0 : index
    %c0_37 = arith.constant 0 : index
    %81 = vector.load %arg3[%c2_35, %c0_36, %c0_37] : memref<3x144x128xf32, #tpu.memory_space<vmem>>, vector<1x144x128xf32>
    %82 = vector.shape_cast %81 : vector<1x144x128xf32> to vector<144x128xf32>
    %cst_38 = arith.constant dense<0.000000e+00> : vector<32x128xf32>
    %83 = tpu.matmul %80, %82, %cst_38 {dimension_numbers = #tpu.dot_dimension_numbers<[1], [0], [0], [1], [0, 0, 1, 1], [], []>} : vector<32x144xf32>, vector<144x128xf32>, vector<32x128xf32> -> vector<32x128xf32>
    %84 = arith.addf %78, %83 : vector<32x128xf32>
    %85 = vector.shape_cast %84 : vector<32x128xf32> to vector<2x16x128xf32>
    %cst_39 = arith.constant dense<0.000000e+00> : vector<2x128xf32>
    %86 = vector.multi_reduction <add>, %85, %cst_39 [1] : vector<2x16x128xf32> to vector<2x128xf32>
    %87 = arith.mulf %85, %85 : vector<2x16x128xf32>
    %cst_40 = arith.constant dense<0.000000e+00> : vector<2x128xf32>
    %88 = vector.multi_reduction <add>, %87, %cst_40 [1] : vector<2x16x128xf32> to vector<2x128xf32>
    %cst_41 = arith.constant dense<0.000000e+00> : vector<2x8xf32>
    %89 = tpu.matmul %86, %7, %cst_41 {dimension_numbers = #tpu.dot_dimension_numbers<[1], [0], [0], [1], [0, 0, 1, 1], [], []>} : vector<2x128xf32>, vector<128x8xf32>, vector<2x8xf32> -> vector<2x8xf32>
    %cst_42 = arith.constant dense<0.000000e+00> : vector<2x8xf32>
    %90 = tpu.matmul %88, %7, %cst_42 {dimension_numbers = #tpu.dot_dimension_numbers<[1], [0], [0], [1], [0, 0, 1, 1], [], []>} : vector<2x128xf32>, vector<128x8xf32>, vector<2x8xf32> -> vector<2x8xf32>
    %cst_43 = arith.constant 3.906250e-03 : f32
    %91 = vector.broadcast %cst_43 : f32 to vector<2x8xf32>
    %92 = arith.mulf %89, %91 : vector<2x8xf32>
    %cst_44 = arith.constant 3.906250e-03 : f32
    %93 = vector.broadcast %cst_44 : f32 to vector<2x8xf32>
    %94 = arith.mulf %90, %93 : vector<2x8xf32>
    %95 = arith.mulf %92, %92 : vector<2x8xf32>
    %96 = arith.subf %94, %95 : vector<2x8xf32>
    %cst_45 = arith.constant 9.99999974E-6 : f32
    %97 = vector.broadcast %cst_45 : f32 to vector<2x8xf32>
    %98 = arith.addf %96, %97 : vector<2x8xf32>
    %99 = math.rsqrt %98 : vector<2x8xf32>
    %100 = vector.broadcast %5 : vector<1x8xf32> to vector<2x8xf32>
    %101 = arith.mulf %99, %100 : vector<2x8xf32>
    %102 = arith.mulf %92, %101 : vector<2x8xf32>
    %103 = vector.broadcast %6 : vector<1x8xf32> to vector<2x8xf32>
    %104 = arith.subf %103, %102 : vector<2x8xf32>
    %cst_46 = arith.constant dense<0.000000e+00> : vector<2x128xf32>
    %105 = tpu.matmul %101, %8, %cst_46 {dimension_numbers = #tpu.dot_dimension_numbers<[1], [0], [0], [1], [0, 0, 1, 1], [], []>} : vector<2x8xf32>, vector<8x128xf32>, vector<2x128xf32> -> vector<2x128xf32>
    %cst_47 = arith.constant dense<0.000000e+00> : vector<2x128xf32>
    %106 = tpu.matmul %104, %8, %cst_47 {dimension_numbers = #tpu.dot_dimension_numbers<[1], [0], [0], [1], [0, 0, 1, 1], [], []>} : vector<2x8xf32>, vector<8x128xf32>, vector<2x128xf32> -> vector<2x128xf32>
    %107 = vector.shape_cast %105 : vector<2x128xf32> to vector<2x1x128xf32>
    %108 = vector.broadcast %107 : vector<2x1x128xf32> to vector<2x16x128xf32>
    %109 = arith.mulf %85, %108 : vector<2x16x128xf32>
    %110 = vector.shape_cast %106 : vector<2x128xf32> to vector<2x1x128xf32>
    %111 = vector.broadcast %110 : vector<2x1x128xf32> to vector<2x16x128xf32>
    %112 = arith.addf %109, %111 : vector<2x16x128xf32>
    %cst_48 = arith.constant dense<0.000000e+00> : vector<2x128xf32>
    %113 = vector.multi_reduction <add>, %30, %cst_48 [1] : vector<2x16x128xf32> to vector<2x128xf32>
    %114 = arith.mulf %30, %30 : vector<2x16x128xf32>
    %cst_49 = arith.constant dense<0.000000e+00> : vector<2x128xf32>
    %115 = vector.multi_reduction <add>, %114, %cst_49 [1] : vector<2x16x128xf32> to vector<2x128xf32>
    %cst_50 = arith.constant dense<0.000000e+00> : vector<2x8xf32>
    %116 = tpu.matmul %113, %7, %cst_50 {dimension_numbers = #tpu.dot_dimension_numbers<[1], [0], [0], [1], [0, 0, 1, 1], [], []>} : vector<2x128xf32>, vector<128x8xf32>, vector<2x8xf32> -> vector<2x8xf32>
    %cst_51 = arith.constant dense<0.000000e+00> : vector<2x8xf32>
    %117 = tpu.matmul %115, %7, %cst_51 {dimension_numbers = #tpu.dot_dimension_numbers<[1], [0], [0], [1], [0, 0, 1, 1], [], []>} : vector<2x128xf32>, vector<128x8xf32>, vector<2x8xf32> -> vector<2x8xf32>
    %cst_52 = arith.constant 3.906250e-03 : f32
    %118 = vector.broadcast %cst_52 : f32 to vector<2x8xf32>
    %119 = arith.mulf %116, %118 : vector<2x8xf32>
    %cst_53 = arith.constant 3.906250e-03 : f32
    %120 = vector.broadcast %cst_53 : f32 to vector<2x8xf32>
    %121 = arith.mulf %117, %120 : vector<2x8xf32>
    %122 = arith.mulf %119, %119 : vector<2x8xf32>
    %123 = arith.subf %121, %122 : vector<2x8xf32>
    %cst_54 = arith.constant 9.99999974E-6 : f32
    %124 = vector.broadcast %cst_54 : f32 to vector<2x8xf32>
    %125 = arith.addf %123, %124 : vector<2x8xf32>
    %126 = math.rsqrt %125 : vector<2x8xf32>
    %127 = vector.broadcast %1 : vector<1x8xf32> to vector<2x8xf32>
    %128 = arith.mulf %126, %127 : vector<2x8xf32>
    %129 = arith.mulf %119, %128 : vector<2x8xf32>
    %130 = vector.broadcast %2 : vector<1x8xf32> to vector<2x8xf32>
    %131 = arith.subf %130, %129 : vector<2x8xf32>
    %cst_55 = arith.constant dense<0.000000e+00> : vector<2x128xf32>
    %132 = tpu.matmul %128, %8, %cst_55 {dimension_numbers = #tpu.dot_dimension_numbers<[1], [0], [0], [1], [0, 0, 1, 1], [], []>} : vector<2x8xf32>, vector<8x128xf32>, vector<2x128xf32> -> vector<2x128xf32>
    %cst_56 = arith.constant dense<0.000000e+00> : vector<2x128xf32>
    %133 = tpu.matmul %131, %8, %cst_56 {dimension_numbers = #tpu.dot_dimension_numbers<[1], [0], [0], [1], [0, 0, 1, 1], [], []>} : vector<2x8xf32>, vector<8x128xf32>, vector<2x128xf32> -> vector<2x128xf32>
    %134 = vector.shape_cast %132 : vector<2x128xf32> to vector<2x1x128xf32>
    %135 = vector.broadcast %134 : vector<2x1x128xf32> to vector<2x16x128xf32>
    %136 = arith.mulf %30, %135 : vector<2x16x128xf32>
    %137 = vector.shape_cast %133 : vector<2x128xf32> to vector<2x1x128xf32>
    %138 = vector.broadcast %137 : vector<2x1x128xf32> to vector<2x16x128xf32>
    %139 = arith.addf %136, %138 : vector<2x16x128xf32>
    %140 = arith.addf %112, %139 : vector<2x16x128xf32>
    %cst_57 = arith.constant 0.000000e+00 : f32
    %141 = vector.broadcast %cst_57 : f32 to vector<2x16x128xf32>
    %142 = arith.maximumf %140, %141 : vector<2x16x128xf32>
    %c0_58 = arith.constant 0 : index
    %c0_59 = arith.constant 0 : index
    %c0_60 = arith.constant 0 : index
    %143 = vector.load %arg7[%c0_58, %c0_59, %c0_60] : memref<2x16x128xf32, #tpu.memory_space<vmem>>, vector<2x16x128xf32>
    tpu.vector_store %arg7[%c0_58, %c0_59, %c0_60], %142 {strides = array<i32>} : memref<2x16x128xf32, #tpu.memory_space<vmem>>, vector<2x16x128xf32>,
    return
  }
  func.func @transform_0(%arg0: i32) -> (i32, i32, i32) {
    %c0_i32 = arith.constant 0 : i32
    %c0_i32_0 = arith.constant 0 : i32
    %c0_i32_1 = arith.constant 0 : i32
    return %arg0, %c0_i32, %c0_i32_0 : i32, i32, i32
  }
  func.func @transform_1(%arg0: i32) -> (i32, i32, i32) {
    %c0_i32 = arith.constant 0 : i32
    %c0_i32_0 = arith.constant 0 : i32
    %c0_i32_1 = arith.constant 0 : i32
    %c0_i32_2 = arith.constant 0 : i32
    return %c0_i32, %c0_i32_0, %c0_i32_1 : i32, i32, i32
  }
  func.func @transform_2(%arg0: i32) -> (i32, i32, i32) {
    %c0_i32 = arith.constant 0 : i32
    %c0_i32_0 = arith.constant 0 : i32
    %c0_i32_1 = arith.constant 0 : i32
    %c0_i32_2 = arith.constant 0 : i32
    return %c0_i32, %c0_i32_0, %c0_i32_1 : i32, i32, i32
  }
  func.func @transform_3(%arg0: i32) -> (i32, i32) {
    %c0_i32 = arith.constant 0 : i32
    %c0_i32_0 = arith.constant 0 : i32
    %c0_i32_1 = arith.constant 0 : i32
    return %c0_i32, %c0_i32_0 : i32, i32
  }
  func.func @transform_4(%arg0: i32) -> (i32, i32) {
    %c0_i32 = arith.constant 0 : i32
    %c0_i32_0 = arith.constant 0 : i32
    %c0_i32_1 = arith.constant 0 : i32
    return %c0_i32, %c0_i32_0 : i32, i32
  }
  func.func @transform_5(%arg0: i32) -> (i32, i32) {
    %c0_i32 = arith.constant 0 : i32
    %c0_i32_0 = arith.constant 0 : i32
    %c0_i32_1 = arith.constant 0 : i32
    return %c0_i32, %c0_i32_0 : i32, i32
  }
  func.func @transform_6(%arg0: i32) -> (i32, i32, i32) {
    %c0_i32 = arith.constant 0 : i32
    %c0_i32_0 = arith.constant 0 : i32
    %c0_i32_1 = arith.constant 0 : i32
    return %arg0, %c0_i32, %c0_i32_0 : i32, i32, i32
  }
}

</mosaic_0001>

<llo_original>
// kernel: tpu_custom_call.1
$region0: #{tpu_custom_call.1}
  #allocation0 [shape = 'u32[]', space=smem, size = 0x4, offset = 0x4, fixed_abs, tag = 'smem constant byte address 0x4 - core index']
  #allocation1 [shape = 'u32[144,128]{1,0:T(1,128)}', space=vmem, size = 0x12000, scoped, tag = 'internal scratch']
  %s0 = inlined_call_operand.vmem [shape: f32[2,18,72], index: 0, kind: input, shape index: {}]
  %s1 = inlined_call_operand.hbm [shape: f32[3,72,256], index: 1, kind: input, shape index: {}]
  %s2 = inlined_call_operand.hbm [shape: f32[3,144,128], index: 2, kind: input, shape index: {}]
  %s3 = inlined_call_operand.vmem [shape: f32[128,8], index: 3, kind: input, shape index: {}]
  %s4 = inlined_call_operand.vmem [shape: f32[8,128], index: 4, kind: input, shape index: {}]
  %s5 = inlined_call_operand.vmem [shape: f32[6,8], index: 5, kind: input, shape index: {}]
  %s6 = inlined_call_operand.hbm [shape: f32[2,16,128], index: 6, kind: output, shape index: {}]
  %s7 = sld [smem:[#allocation0]]
  $region42: #{tpu_custom_call.1} parent=0
    _
  %s9 = ssub.s32 1, %s7
  %s10 = scalar_select 0, %s9, %s7
  $region1: #{tpu_custom_call.1} parent=0
    #allocation2 [shape = 'u8[221184]{0}', space=vmem, size = 0x36000, scoped, tag = 'input window, operand 1, single buffered']
    #allocation3 [shape = 's32[1]{0}', space=sflag, size = 0x4, scoped, tag = 'scoped memory for tpu_custom_call.1']
    #allocation4 [shape = 's32[1]{0}', space=sflag, size = 0x4, scoped, tag = 'scoped memory for tpu_custom_call.1']
    #allocation5 [shape = 'u8[221184]{0}', space=vmem, size = 0x36000, scoped, tag = 'input window, operand 2, single buffered']
    #allocation6 [shape = 's32[1]{0}', space=sflag, size = 0x4, scoped, tag = 'scoped memory for tpu_custom_call.1']
    #allocation7 [shape = 'u8[16384]{0}', space=vmem, size = 0x4000, scoped, tag = 'output window, operand 0, single buffered']
    %11 = vsyncpa [#allocation3], 0
    %12 = vsyncpa [#allocation6], 0
    %13 = vsyncpa [#allocation4], 0
    // Predicated region
    $region2: #{tpu_custom_call.1} parent=1 // pred_check
      _
    $region3: #{tpu_custom_call.1} parent=1 // pred_check_branch
      %15 = sbr.rel (0) target = $region5
    $region4: #{tpu_custom_call.1} parent=1 // pred_region
      _
    $region5: #{tpu_custom_call.1} parent=1 // pred_fallthru
      _
    // Predicated region
    $region6: #{tpu_custom_call.1} parent=1 // pred_check
      _
    $region7: #{tpu_custom_call.1} parent=1 // pred_check_branch
      %17 = sbr.rel (0) target = $region9
    $region8: #{tpu_custom_call.1} parent=1 // pred_region
      %s19 = ssub.s32 6912, 6912
      %20 = vsyncadd [#allocation3], %s19
      %s21 = sshll.u32 [#allocation2], 4
      %s22 = int_to_ptr.vmem [resolvable:$true] %s21
      %27 = dma.hbm_to_vmem [thread:$0]  %s1, 6912, %s22, [#allocation3], 256, 256, 16
    $region9: #{tpu_custom_call.1} parent=1 // pred_fallthru
      _
    // Predicated region
    $region10: #{tpu_custom_call.1} parent=1 // pred_check
      _
    $region11: #{tpu_custom_call.1} parent=1 // pred_check_branch
      %29 = sbr.rel (0) target = $region13
    $region12: #{tpu_custom_call.1} parent=1 // pred_region
      %s31 = ssub.s32 6912, 6912
      %32 = vsyncadd [#allocation6], %s31
      %s33 = sshll.u32 [#allocation5], 4
      %s34 = int_to_ptr.vmem [resolvable:$true] %s33
      %39 = dma.hbm_to_vmem [thread:$0]  %s2, 6912, %s34, [#allocation6], 128, 128, 8
    $region13: #{tpu_custom_call.1} parent=1 // pred_fallthru
      _
    // Predicated region
    $region14: #{tpu_custom_call.1} parent=1 // pred_check
      _
    $region15: #{tpu_custom_call.1} parent=1 // pred_check_branch
      %41 = sbr.rel (0) target = $region17
    $region16: #{tpu_custom_call.1} parent=1 // pred_region
      _
    $region17: #{tpu_custom_call.1} parent=1 // pred_fallthru
      _
    // Predicated region
    $region18: #{tpu_custom_call.1} parent=1 // pred_check
      _
    $region19: #{tpu_custom_call.1} parent=1 // pred_check_branch
      %43 = sbr.rel (0) target = $region21
    $region20: #{tpu_custom_call.1} parent=1 // pred_region
      _
    $region21: #{tpu_custom_call.1} parent=1 // pred_fallthru
      _
    // Predicated region
    $region22: #{tpu_custom_call.1} parent=1 // pred_check
      _
    $region23: #{tpu_custom_call.1} parent=1 // pred_check_branch
      %45 = sbr.rel (0) target = $region25
    $region24: #{tpu_custom_call.1} parent=1 // pred_region
      _
    $region25: #{tpu_custom_call.1} parent=1 // pred_fallthru
      _
    // Predicated region
    $region26: #{tpu_custom_call.1} parent=1 // pred_check
      _
    $region27: #{tpu_custom_call.1} parent=1 // pred_check_branch
      %47 = sbr.rel (0) target = $region29
    $region28: #{tpu_custom_call.1} parent=1 // pred_region
      %48 = dma.done [#allocation3], 6912
    $region29: #{tpu_custom_call.1} parent=1 // pred_fallthru
      _
    // Predicated region
    $region30: #{tpu_custom_call.1} parent=1 // pred_check
      _
    $region31: #{tpu_custom_call.1} parent=1 // pred_check_branch
      %50 = sbr.rel (0) target = $region33
    $region32: #{tpu_custom_call.1} parent=1 // pred_region
      %51 = dma.done [#allocation6], 6912
    $region33: #{tpu_custom_call.1} parent=1 // pred_fallthru
      _
    %v52 = vld [vmem:[%s5] sm:$0x3f]
    %v53 = vld [vmem:[%s3] sm:$0xff]
    %v54 = vld [vmem:[%s3 + $0x8] sm:$0xff]
    %v55 = vld [vmem:[%s3 + $0x10] sm:$0xff]
    %v56 = vld [vmem:[%s3 + $0x18] sm:$0xff]
    %v57 = vld [vmem:[%s3 + $0x20] sm:$0xff]
    %v58 = vld [vmem:[%s3 + $0x28] sm:$0xff]
    %v59 = vld [vmem:[%s3 + $0x30] sm:$0xff]
    %v60 = vld [vmem:[%s3 + $0x38] sm:$0xff]
    %v61 = vld [vmem:[%s3 + $0x40] sm:$0xff]
    %v62 = vld [vmem:[%s3 + $0x48] sm:$0xff]
    %v63 = vld [vmem:[%s3 + $0x50] sm:$0xff]
    %v64 = vld [vmem:[%s3 + $0x58] sm:$0xff]
    %v65 = vld [vmem:[%s3 + $0x60] sm:$0xff]
    %v66 = vld [vmem:[%s3 + $0x68] sm:$0xff]
    %v67 = vld [vmem:[%s3 + $0x70] sm:$0xff]
    %v68 = vld [vmem:[%s3 + $0x78] sm:$0xff]
    %v69 = vld [vmem:[%s4] sm:$0xff]
    %v70 = vld [vmem:[%s0] sm:$0xff]
    %v71 = vld [vmem:[%s0 + $0x8] sm:$0xff]
    %v72 = vld [vmem:[%s0 + $0x10] sm:$0x3]
    %v73 = vld [vmem:[%s0 + $0x18] sm:$0xff]
    %v74 = vld [vmem:[%s0 + $0x20] sm:$0xff]
    %v75 = vld [vmem:[%s0 + $0x28] sm:$0x3]
    %v76 = vld [vmem:[#allocation2] sm:$0xff]
    %v77 = vld [vmem:[#allocation2 + $0x8] sm:$0xff]
    %v78 = vld [vmem:[#allocation2 + $0x10] sm:$0xff]
    %v79 = vld [vmem:[#allocation2 + $0x18] sm:$0xff]
    %v80 = vld [vmem:[#allocation2 + $0x20] sm:$0xff]
    %v81 = vld [vmem:[#allocation2 + $0x28] sm:$0xff]
    %v82 = vld [vmem:[#allocation2 + $0x30] sm:$0xff]
    %v83 = vld [vmem:[#allocation2 + $0x38] sm:$0xff]
    %v84 = vld [vmem:[#allocation2 + $0x40] sm:$0xff]
    %v85 = vld [vmem:[#allocation2 + $0x48] sm:$0xff]
    %v86 = vld [vmem:[#allocation2 + $0x50] sm:$0xff]
    %v87 = vld [vmem:[#allocation2 + $0x58] sm:$0xff]
    %v88 = vld [vmem:[#allocation2 + $0x60] sm:$0xff]
    %v89 = vld [vmem:[#allocation2 + $0x68] sm:$0xff]
    %v90 = vld [vmem:[#allocation2 + $0x70] sm:$0xff]
    %v91 = vld [vmem:[#allocation2 + $0x78] sm:$0xff]
    %v92 = vld [vmem:[#allocation2 + $0x80] sm:$0xff]
    %v93 = vld [vmem:[#allocation2 + $0x88] sm:$0xff]
    %vm100 = vcmask 1046528
    %v101 = vrot.slane %v70, 1
    %v102 = vrot.slane %v71, 1
    %v103 = vsel %vm100, %v101, %v102
    %v104 = vrot.slane %v72, 1
    %v105 = vsel %vm100, %v102, %v104
    %v106 = vrot.slane %v73, 1
    %v107 = vrot.slane %v74, 1
    %v108 = vsel %vm100, %v106, %v107
    %v109 = vrot.slane %v75, 1
    %v110 = vsel %vm100, %v107, %v109
    %s111 = scalar_lea.vmem [#allocation2], 144
    %v112 = vld [vmem:[%s111] sm:$0xff]
    %v113 = vld [vmem:[%s111 + $0x8] sm:$0xff]
    %v114 = vld [vmem:[%s111 + $0x10] sm:$0xff]
    %v115 = vld [vmem:[%s111 + $0x18] sm:$0xff]
    %v116 = vld [vmem:[%s111 + $0x20] sm:$0xff]
    %v117 = vld [vmem:[%s111 + $0x28] sm:$0xff]
    %v118 = vld [vmem:[%s111 + $0x30] sm:$0xff]
    %v119 = vld [vmem:[%s111 + $0x38] sm:$0xff]
    %v120 = vld [vmem:[%s111 + $0x40] sm:$0xff]
    %v121 = vld [vmem:[%s111 + $0x48] sm:$0xff]
    %v122 = vld [vmem:[%s111 + $0x50] sm:$0xff]
    %v123 = vld [vmem:[%s111 + $0x58] sm:$0xff]
    %v124 = vld [vmem:[%s111 + $0x60] sm:$0xff]
    %v125 = vld [vmem:[%s111 + $0x68] sm:$0xff]
    %v126 = vld [vmem:[%s111 + $0x70] sm:$0xff]
    %v127 = vld [vmem:[%s111 + $0x78] sm:$0xff]
    %v128 = vld [vmem:[%s111 + $0x80] sm:$0xff]
    %v129 = vld [vmem:[%s111 + $0x88] sm:$0xff]
    %vm130 = vcmask 588800
    %v131 = vsel %vm130, %v103, 0
    %v133 = vsel %vm130, %v105, 0
    %v135 = vsel %vm130, %v108, 0
    %v137 = vsel %vm130, %v110, 0
    %139 = vmatprep.subr.mxu0 0.0
    %140 = vmatpush1.msra.mxu0 0.0
    %141 = vmatprep.subr.mxu0 0.0
    %142 = vmatpush1.msra.mxu0 0.0
    %143 = vmatprep.subr.mxu0 0.0
    %144 = vmatpush1.msra.mxu0 0.0
    %145 = vmatprep.subr.mxu0 0.0
    %146 = vmatpush1.msra.mxu0 0.0
    %147 = vmatprep.subr.mxu0 0.0
    %148 = vmatpush1.msra.mxu0 0.0
    %149 = vmatprep.subr.mxu0 0.0
    %150 = vmatpush1.msra.mxu0 0.0
    %151 = vmatprep.subr.mxu0 0.0
    %152 = vmatpush1.msra.mxu0 0.0
    %153 = vmatprep.subr.mxu0 %v129
    %154 = vmatpush1.msra.mxu0 %v128
    %155 = vmatprep.subr.mxu0 %v127
    %156 = vmatpush1.msra.mxu0 %v126
    %157 = vmatprep.subr.mxu0 %v125
    %158 = vmatpush1.msra.mxu0 %v124
    %159 = vmatprep.subr.mxu0 %v123
    %160 = vmatpush1.msra.mxu0 %v122
    %161 = vmatprep.subr.mxu0 %v121
    %162 = vmatpush1.msra.mxu0 %v120
    %163 = vmatprep.subr.mxu0 %v119
    %164 = vmatpush1.msra.mxu0 %v118
    %165 = vmatprep.subr.mxu0 %v117
    %166 = vmatpush1.msra.mxu0 %v116
    %167 = vmatprep.subr.mxu0 %v115
    %168 = vmatpush1.msra.mxu0 %v114
    %169 = vmatprep.subr.mxu0 %v113
    %170 = vmatpush1.msra.mxu0 %v112
    %171 = vmatprep.subr.mxu0 0.0
    %172 = vmatpush2.msra.mxu0 0.0
    %173 = vmatprep.subr.mxu0 0.0
    %174 = vmatpush2.msra.mxu0 0.0
    %175 = vmatprep.subr.mxu0 0.0
    %176 = vmatpush2.msra.mxu0 0.0
    %177 = vmatprep.subr.mxu0 0.0
    %178 = vmatpush2.msra.mxu0 0.0
    %179 = vmatprep.subr.mxu0 0.0
    %180 = vmatpush2.msra.mxu0 0.0
    %181 = vmatprep.subr.mxu0 0.0
    %182 = vmatpush2.msra.mxu0 0.0
    %183 = vmatprep.subr.mxu0 0.0
    %184 = vmatpush2.msra.mxu0 0.0
    %185 = vmatprep.subr.mxu0 0.0
    %186 = vmatpush2.msra.mxu0 0.0
    %187 = vmatprep.subr.mxu0 0.0
    %188 = vmatpush2.msra.mxu0 0.0
    %189 = vmatprep.subr.mxu0 0.0
    %190 = vmatpush2.msra.mxu0 0.0
    %191 = vmatprep.subr.mxu0 0.0
    %192 = vmatpush2.msra.mxu0 0.0
    %193 = vmatprep.subr.mxu0 0.0
    %194 = vmatpush2.msra.mxu0 0.0
    %195 = vmatprep.subr.mxu0 0.0
    %196 = vmatpush2.msra.mxu0 0.0
    %197 = vmatprep.subr.mxu0 0.0
    %198 = vmatpush2.msra.mxu0 0.0
    %199 = vmatprep.subr.mxu0 0.0
    %200 = vmatpush2.msra.mxu0 0.0
    %201 = vmatprep.subr.mxu0 0.0
    %202 = vmatpush2.msra.mxu0 0.0
    %203 = vmatprep.mubr.f32.mxu0 0.0
    %204 = vmatmul.mubr.f32.gmra.mxu0 %v131
    %v205 = vpop.f32.mrf.mxu0
    %v206 = vadd.f32 0.0, %v205
    %v207 = vpop.f32.mrf.mxu0
    %v208 = vadd.f32 0.0, %v207
    %209 = vmatprep.mubr.f32.mxu0 0.0
    %210 = vmatmul.mubr.f32.gmra.mxu0 %v133
    %v211 = vpop.f32.mrf.mxu0
    %v212 = vadd.f32 0.0, %v211
    %v213 = vpop.f32.mrf.mxu0
    %v214 = vadd.f32 0.0, %v213
    %215 = vmatprep.mubr.f32.mxu0 0.0
    %216 = vmatmul.mubr.f32.gmra.mxu0 %v135
    %v217 = vpop.f32.mrf.mxu0
    %v218 = vadd.f32 0.0, %v217
    %v219 = vpop.f32.mrf.mxu0
    %v220 = vadd.f32 0.0, %v219
    %221 = vmatprep.mubr.f32.mxu0 0.0
    %222 = vmatmul.mubr.f32.gmra.mxu0 %v137
    %v223 = vpop.f32.mrf.mxu0
    %v224 = vadd.f32 0.0, %v223
    %v225 = vpop.f32.mrf.mxu0
    %v226 = vadd.f32 0.0, %v225
    %227 = vdwg.mxu0
    %v228 = vsel %vm130, %v70, 0
    %v230 = vsel %vm130, %v71, 0
    %v232 = vsel %vm130, %v73, 0
    %v234 = vsel %vm130, %v74, 0
    %236 = vmatprep.subr.mxu0 0.0
    %237 = vmatpush1.msra.mxu0 0.0
    %238 = vmatprep.subr.mxu0 0.0
    %239 = vmatpush1.msra.mxu0 0.0
    %240 = vmatprep.subr.mxu0 0.0
    %241 = vmatpush1.msra.mxu0 0.0
    %242 = vmatprep.subr.mxu0 0.0
    %243 = vmatpush1.msra.mxu0 0.0
    %244 = vmatprep.subr.mxu0 0.0
    %245 = vmatpush1.msra.mxu0 0.0
    %246 = vmatprep.subr.mxu0 0.0
    %247 = vmatpush1.msra.mxu0 0.0
    %248 = vmatprep.subr.mxu0 0.0
    %249 = vmatpush1.msra.mxu0 0.0
    %250 = vmatprep.subr.mxu0 %v93
    %251 = vmatpush1.msra.mxu0 %v92
    %252 = vmatprep.subr.mxu0 %v91
    %253 = vmatpush1.msra.mxu0 %v90
    %254 = vmatprep.subr.mxu0 %v89
    %255 = vmatpush1.msra.mxu0 %v88
    %256 = vmatprep.subr.mxu0 %v87
    %257 = vmatpush1.msra.mxu0 %v86
    %258 = vmatprep.subr.mxu0 %v85
    %259 = vmatpush1.msra.mxu0 %v84
    %260 = vmatprep.subr.mxu0 %v83
    %261 = vmatpush1.msra.mxu0 %v82
    %262 = vmatprep.subr.mxu0 %v81
    %263 = vmatpush1.msra.mxu0 %v80
    %264 = vmatprep.subr.mxu0 %v79
    %265 = vmatpush1.msra.mxu0 %v78
    %266 = vmatprep.subr.mxu0 %v77
    %267 = vmatpush1.msra.mxu0 %v76
    %268 = vmatprep.subr.mxu0 0.0
    %269 = vmatpush2.msra.mxu0 0.0
    %270 = vmatprep.subr.mxu0 0.0
    %271 = vmatpush2.msra.mxu0 0.0
    %272 = vmatprep.subr.mxu0 0.0
    %273 = vmatpush2.msra.mxu0 0.0
    %274 = vmatprep.subr.mxu0 0.0
    %275 = vmatpush2.msra.mxu0 0.0
    %276 = vmatprep.subr.mxu0 0.0
    %277 = vmatpush2.msra.mxu0 0.0
    %278 = vmatprep.subr.mxu0 0.0
    %279 = vmatpush2.msra.mxu0 0.0
    %280 = vmatprep.subr.mxu0 0.0
    %281 = vmatpush2.msra.mxu0 0.0
    %282 = vmatprep.subr.mxu0 0.0
    %283 = vmatpush2.msra.mxu0 0.0
    %284 = vmatprep.subr.mxu0 0.0
    %285 = vmatpush2.msra.mxu0 0.0
    %286 = vmatprep.subr.mxu0 0.0
    %287 = vmatpush2.msra.mxu0 0.0
    %288 = vmatprep.subr.mxu0 0.0
    %289 = vmatpush2.msra.mxu0 0.0
    %290 = vmatprep.subr.mxu0 0.0
    %291 = vmatpush2.msra.mxu0 0.0
    %292 = vmatprep.subr.mxu0 0.0
    %293 = vmatpush2.msra.mxu0 0.0
    %294 = vmatprep.subr.mxu0 0.0
    %295 = vmatpush2.msra.mxu0 0.0
    %296 = vmatprep.subr.mxu0 0.0
    %297 = vmatpush2.msra.mxu0 0.0
    %298 = vmatprep.subr.mxu0 0.0
    %299 = vmatpush2.msra.mxu0 0.0
    %300 = vmatprep.mubr.f32.mxu0 0.0
    %301 = vmatmul.mubr.f32.gmra.mxu0 %v228
    %v302 = vpop.f32.mrf.mxu0
    %v303 = vadd.f32 %v206, %v302
    %v304 = vpop.f32.mrf.mxu0
    %v305 = vadd.f32 %v208, %v304
    %306 = vmatprep.mubr.f32.mxu0 0.0
    %307 = vmatmul.mubr.f32.gmra.mxu0 %v230
    %v308 = vpop.f32.mrf.mxu0
    %v309 = vadd.f32 %v212, %v308
    %v310 = vpop.f32.mrf.mxu0
    %v311 = vadd.f32 %v214, %v310
    %312 = vmatprep.mubr.f32.mxu0 0.0
    %313 = vmatmul.mubr.f32.gmra.mxu0 %v232
    %v314 = vpop.f32.mrf.mxu0
    %v315 = vadd.f32 %v218, %v314
    %v316 = vpop.f32.mrf.mxu0
    %v317 = vadd.f32 %v220, %v316
    %318 = vmatprep.mubr.f32.mxu0 0.0
    %319 = vmatmul.mubr.f32.gmra.mxu0 %v234
    %v320 = vpop.f32.mrf.mxu0
    %v321 = vadd.f32 %v224, %v320
    %v322 = vpop.f32.mrf.mxu0
    %v323 = vadd.f32 %v226, %v322
    %324 = vdwg.mxu0
    %vm325 = vcmask 1045504
    %v326 = vrot.slane %v70, 2
    %v327 = vrot.slane %v71, 2
    %v328 = vsel %vm325, %v326, %v327
    %v329 = vrot.slane %v72, 2
    %v330 = vsel %vm325, %v327, %v329
    %v331 = vrot.slane %v73, 2
    %v332 = vrot.slane %v74, 2
    %v333 = vsel %vm325, %v331, %v332
    %v334 = vrot.slane %v75, 2
    %v335 = vsel %vm325, %v332, %v334
    %s336 = scalar_lea.vmem [#allocation2], 288
    %v337 = vld [vmem:[%s336] sm:$0xff]
    %v338 = vld [vmem:[%s336 + $0x8] sm:$0xff]
    %v339 = vld [vmem:[%s336 + $0x10] sm:$0xff]
    %v340 = vld [vmem:[%s336 + $0x18] sm:$0xff]
    %v341 = vld [vmem:[%s336 + $0x20] sm:$0xff]
    %v342 = vld [vmem:[%s336 + $0x28] sm:$0xff]
    %v343 = vld [vmem:[%s336 + $0x30] sm:$0xff]
    %v344 = vld [vmem:[%s336 + $0x38] sm:$0xff]
    %v345 = vld [vmem:[%s336 + $0x40] sm:$0xff]
    %v346 = vld [vmem:[%s336 + $0x48] sm:$0xff]
    %v347 = vld [vmem:[%s336 + $0x50] sm:$0xff]
    %v348 = vld [vmem:[%s336 + $0x58] sm:$0xff]
    %v349 = vld [vmem:[%s336 + $0x60] sm:$0xff]
    %v350 = vld [vmem:[%s336 + $0x68] sm:$0xff]
    %v351 = vld [vmem:[%s336 + $0x70] sm:$0xff]
    %v352 = vld [vmem:[%s336 + $0x78] sm:$0xff]
    %v353 = vld [vmem:[%s336 + $0x80] sm:$0xff]
    %v354 = vld [vmem:[%s336 + $0x88] sm:$0xff]
    %v355 = vsel %vm130, %v328, 0
    %v357 = vsel %vm130, %v330, 0
    %v359 = vsel %vm130, %v333, 0
    %v361 = vsel %vm130, %v335, 0
    %363 = vmatprep.subr.mxu0 0.0
    %364 = vmatpush1.msra.mxu0 0.0
    %365 = vmatprep.subr.mxu0 0.0
    %366 = vmatpush1.msra.mxu0 0.0
    %367 = vmatprep.subr.mxu0 0.0
    %368 = vmatpush1.msra.mxu0 0.0
    %369 = vmatprep.subr.mxu0 0.0
    %370 = vmatpush1.msra.mxu0 0.0
    %371 = vmatprep.subr.mxu0 0.0
    %372 = vmatpush1.msra.mxu0 0.0
    %373 = vmatprep.subr.mxu0 0.0
    %374 = vmatpush1.msra.mxu0 0.0
    %375 = vmatprep.subr.mxu0 0.0
    %376 = vmatpush1.msra.mxu0 0.0
    %377 = vmatprep.subr.mxu0 %v354
    %378 = vmatpush1.msra.mxu0 %v353
    %379 = vmatprep.subr.mxu0 %v352
    %380 = vmatpush1.msra.mxu0 %v351
    %381 = vmatprep.subr.mxu0 %v350
    %382 = vmatpush1.msra.mxu0 %v349
    %383 = vmatprep.subr.mxu0 %v348
    %384 = vmatpush1.msra.mxu0 %v347
    %385 = vmatprep.subr.mxu0 %v346
    %386 = vmatpush1.msra.mxu0 %v345
    %387 = vmatprep.subr.mxu0 %v344
    %388 = vmatpush1.msra.mxu0 %v343
    %389 = vmatprep.subr.mxu0 %v342
    %390 = vmatpush1.msra.mxu0 %v341
    %391 = vmatprep.subr.mxu0 %v340
    %392 = vmatpush1.msra.mxu0 %v339
    %393 = vmatprep.subr.mxu0 %v338
    %394 = vmatpush1.msra.mxu0 %v337
    %395 = vmatprep.subr.mxu0 0.0
    %396 = vmatpush2.msra.mxu0 0.0
    %397 = vmatprep.subr.mxu0 0.0
    %398 = vmatpush2.msra.mxu0 0.0
    %399 = vmatprep.subr.mxu0 0.0
    %400 = vmatpush2.msra.mxu0 0.0
    %401 = vmatprep.subr.mxu0 0.0
    %402 = vmatpush2.msra.mxu0 0.0
    %403 = vmatprep.subr.mxu0 0.0
    %404 = vmatpush2.msra.mxu0 0.0
    %405 = vmatprep.subr.mxu0 0.0
    %406 = vmatpush2.msra.mxu0 0.0
    %407 = vmatprep.subr.mxu0 0.0
    %408 = vmatpush2.msra.mxu0 0.0
    %409 = vmatprep.subr.mxu0 0.0
    %410 = vmatpush2.msra.mxu0 0.0
    %411 = vmatprep.subr.mxu0 0.0
    %412 = vmatpush2.msra.mxu0 0.0
    %413 = vmatprep.subr.mxu0 0.0
    %414 = vmatpush2.msra.mxu0 0.0
    %415 = vmatprep.subr.mxu0 0.0
    %416 = vmatpush2.msra.mxu0 0.0
    %417 = vmatprep.subr.mxu0 0.0
    %418 = vmatpush2.msra.mxu0 0.0
    %419 = vmatprep.subr.mxu0 0.0
    %420 = vmatpush2.msra.mxu0 0.0
    %421 = vmatprep.subr.mxu0 0.0
    %422 = vmatpush2.msra.mxu0 0.0
    %423 = vmatprep.subr.mxu0 0.0
    %424 = vmatpush2.msra.mxu0 0.0
    %425 = vmatprep.subr.mxu0 0.0
    %426 = vmatpush2.msra.mxu0 0.0
    %427 = vmatprep.mubr.f32.mxu0 0.0
    %428 = vmatmul.mubr.f32.gmra.mxu0 %v355
    %v429 = vpop.f32.mrf.mxu0
    %v430 = vadd.f32 0.0, %v429
    %v431 = vpop.f32.mrf.mxu0
    %v432 = vadd.f32 0.0, %v431
    %433 = vmatprep.mubr.f32.mxu0 0.0
    %434 = vmatmul.mubr.f32.gmra.mxu0 %v357
    %v435 = vpop.f32.mrf.mxu0
    %v436 = vadd.f32 0.0, %v435
    %v437 = vpop.f32.mrf.mxu0
    %v438 = vadd.f32 0.0, %v437
    %439 = vmatprep.mubr.f32.mxu0 0.0
    %440 = vmatmul.mubr.f32.gmra.mxu0 %v359
    %v441 = vpop.f32.mrf.mxu0
    %v442 = vadd.f32 0.0, %v441
    %v443 = vpop.f32.mrf.mxu0
    %v444 = vadd.f32 0.0, %v443
    %445 = vmatprep.mubr.f32.mxu0 0.0
    %446 = vmatmul.mubr.f32.gmra.mxu0 %v361
    %v447 = vpop.f32.mrf.mxu0
    %v448 = vadd.f32 0.0, %v447
    %v449 = vpop.f32.mrf.mxu0
    %v450 = vadd.f32 0.0, %v449
    %451 = vdwg.mxu0
    %v452 = vadd.f32 %v303, %v430
    %v453 = vadd.f32 %v305, %v432
    %v454 = vadd.f32 %v309, %v436
    %v455 = vadd.f32 %v311, %v438
    %v456 = vadd.f32 %v315, %v442
    %v457 = vadd.f32 %v317, %v444
    %v458 = vadd.f32 %v321, %v448
    %v459 = vadd.f32 %v323, %v450
    %v460 = vadd.f32 %v452, %v454
    %v461 = vrot.slane %v460, 4
    %v462 = vadd.f32 %v460, %v461
    %v463 = vrot.slane %v462, 2
    %v464 = vadd.f32 %v462, %v463
    %v465 = vrot.slane %v464, 1
    %v466 = vadd.f32 %v464, %v465
    %v467 = vadd.f32 %v456, %v458
    %v468 = vrot.slane %v467, 4
    %v469 = vadd.f32 %v467, %v468
    %v470 = vrot.slane %v469, 2
    %v471 = vadd.f32 %v469, %v470
    %v472 = vrot.slane %v471, 1
    %v473 = vadd.f32 %v471, %v472
    %v474 = vmul.f32 %v452, %v452
    %v475 = vmul.f32 %v454, %v454
    %v476 = vmul.f32 %v456, %v456
    %v477 = vmul.f32 %v458, %v458
    %v478 = vadd.f32 %v474, %v475
    %v479 = vrot.slane %v478, 4
    %v480 = vadd.f32 %v478, %v479
    %v481 = vrot.slane %v480, 2
    %v482 = vadd.f32 %v480, %v481
    %v483 = vrot.slane %v482, 1
    %v484 = vadd.f32 %v482, %v483
    %v485 = vadd.f32 %v476, %v477
    %v486 = vrot.slane %v485, 4
    %v487 = vadd.f32 %v485, %v486
    %v488 = vrot.slane %v487, 2
    %v489 = vadd.f32 %v487, %v488
    %v490 = vrot.slane %v489, 1
    %v491 = vadd.f32 %v489, %v490
    %vm494 = vcmask 1041409
    %v495 = vsel %vm494, %v473, %v466
    %497 = vmatprep.subr.mxu0 0.0
    %498 = vmatpush1.msra.mxu0 %v68
    %499 = vmatprep.subr.mxu0 0.0
    %500 = vmatpush1.msra.mxu0 %v67
    %501 = vmatprep.subr.mxu0 0.0
    %502 = vmatpush1.msra.mxu0 %v66
    %503 = vmatprep.subr.mxu0 0.0
    %504 = vmatpush1.msra.mxu0 %v65
    %505 = vmatprep.subr.mxu0 0.0
    %506 = vmatpush1.msra.mxu0 %v64
    %507 = vmatprep.subr.mxu0 0.0
    %508 = vmatpush1.msra.mxu0 %v63
    %509 = vmatprep.subr.mxu0 0.0
    %510 = vmatpush1.msra.mxu0 %v62
    %511 = vmatprep.subr.mxu0 0.0
    %512 = vmatpush1.msra.mxu0 %v61
    %513 = vmatprep.subr.mxu0 0.0
    %514 = vmatpush1.msra.mxu0 %v60
    %515 = vmatprep.subr.mxu0 0.0
    %516 = vmatpush1.msra.mxu0 %v59
    %517 = vmatprep.subr.mxu0 0.0
    %518 = vmatpush1.msra.mxu0 %v58
    %519 = vmatprep.subr.mxu0 0.0
    %520 = vmatpush1.msra.mxu0 %v57
    %521 = vmatprep.subr.mxu0 0.0
    %522 = vmatpush1.msra.mxu0 %v56
    %523 = vmatprep.subr.mxu0 0.0
    %524 = vmatpush1.msra.mxu0 %v55
    %525 = vmatprep.subr.mxu0 0.0
    %526 = vmatpush1.msra.mxu0 %v54
    %527 = vmatprep.subr.mxu0 0.0
    %528 = vmatpush1.msra.mxu0 %v53
    %529 = vmatprep.subr.mxu0 0.0
    %530 = vmatpush2.msra.mxu0 0.0
    %531 = vmatprep.subr.mxu0 0.0
    %532 = vmatpush2.msra.mxu0 0.0
    %533 = vmatprep.subr.mxu0 0.0
    %534 = vmatpush2.msra.mxu0 0.0
    %535 = vmatprep.subr.mxu0 0.0
    %536 = vmatpush2.msra.mxu0 0.0
    %537 = vmatprep.subr.mxu0 0.0
    %538 = vmatpush2.msra.mxu0 0.0
    %539 = vmatprep.subr.mxu0 0.0
    %540 = vmatpush2.msra.mxu0 0.0
    %541 = vmatprep.subr.mxu0 0.0
    %542 = vmatpush2.msra.mxu0 0.0
    %543 = vmatprep.subr.mxu0 0.0
    %544 = vmatpush2.msra.mxu0 0.0
    %545 = vmatprep.subr.mxu0 0.0
    %546 = vmatpush2.msra.mxu0 0.0
    %547 = vmatprep.subr.mxu0 0.0
    %548 = vmatpush2.msra.mxu0 0.0
    %549 = vmatprep.subr.mxu0 0.0
    %550 = vmatpush2.msra.mxu0 0.0
    %551 = vmatprep.subr.mxu0 0.0
    %552 = vmatpush2.msra.mxu0 0.0
    %553 = vmatprep.subr.mxu0 0.0
    %554 = vmatpush2.msra.mxu0 0.0
    %555 = vmatprep.subr.mxu0 0.0
    %556 = vmatpush2.msra.mxu0 0.0
    %557 = vmatprep.subr.mxu0 0.0
    %558 = vmatpush2.msra.mxu0 0.0
    %559 = vmatprep.subr.mxu0 0.0
    %560 = vmatpush2.msra.mxu0 0.0
    %561 = vmatprep.mubr.f32.mxu0 0.0
    %562 = vmatmul.mubr.f32.gmra.mxu0 %v495
    %v563 = vpop.f32.mrf.mxu0
    %v564 = vadd.f32 0.0, %v563
    %v565 = vpop.f32.mrf.mxu0
    %566 = vdwg.mxu0
    %v569 = vsel %vm494, %v491, %v484
    %571 = vmatprep.subr.mxu0 0.0
    %572 = vmatpush1.msra.mxu0 %v68
    %573 = vmatprep.subr.mxu0 0.0
    %574 = vmatpush1.msra.mxu0 %v67
    %575 = vmatprep.subr.mxu0 0.0
    %576 = vmatpush1.msra.mxu0 %v66
    %577 = vmatprep.subr.mxu0 0.0
    %578 = vmatpush1.msra.mxu0 %v65
    %579 = vmatprep.subr.mxu0 0.0
    %580 = vmatpush1.msra.mxu0 %v64
    %581 = vmatprep.subr.mxu0 0.0
    %582 = vmatpush1.msra.mxu0 %v63
    %583 = vmatprep.subr.mxu0 0.0
    %584 = vmatpush1.msra.mxu0 %v62
    %585 = vmatprep.subr.mxu0 0.0
    %586 = vmatpush1.msra.mxu0 %v61
    %587 = vmatprep.subr.mxu0 0.0
    %588 = vmatpush1.msra.mxu0 %v60
    %589 = vmatprep.subr.mxu0 0.0
    %590 = vmatpush1.msra.mxu0 %v59
    %591 = vmatprep.subr.mxu0 0.0
    %592 = vmatpush1.msra.mxu0 %v58
    %593 = vmatprep.subr.mxu0 0.0
    %594 = vmatpush1.msra.mxu0 %v57
    %595 = vmatprep.subr.mxu0 0.0
    %596 = vmatpush1.msra.mxu0 %v56
    %597 = vmatprep.subr.mxu0 0.0
    %598 = vmatpush1.msra.mxu0 %v55
    %599 = vmatprep.subr.mxu0 0.0
    %600 = vmatpush1.msra.mxu0 %v54
    %601 = vmatprep.subr.mxu0 0.0
    %602 = vmatpush1.msra.mxu0 %v53
    %603 = vmatprep.subr.mxu0 0.0
    %604 = vmatpush2.msra.mxu0 0.0
    %605 = vmatprep.subr.mxu0 0.0
    %606 = vmatpush2.msra.mxu0 0.0
    %607 = vmatprep.subr.mxu0 0.0
    %608 = vmatpush2.msra.mxu0 0.0
    %609 = vmatprep.subr.mxu0 0.0
    %610 = vmatpush2.msra.mxu0 0.0
    %611 = vmatprep.subr.mxu0 0.0
    %612 = vmatpush2.msra.mxu0 0.0
    %613 = vmatprep.subr.mxu0 0.0
    %614 = vmatpush2.msra.mxu0 0.0
    %615 = vmatprep.subr.mxu0 0.0
    %616 = vmatpush2.msra.mxu0 0.0
    %617 = vmatprep.subr.mxu0 0.0
    %618 = vmatpush2.msra.mxu0 0.0
    %619 = vmatprep.subr.mxu0 0.0
    %620 = vmatpush2.msra.mxu0 0.0
    %621 = vmatprep.subr.mxu0 0.0
    %622 = vmatpush2.msra.mxu0 0.0
    %623 = vmatprep.subr.mxu0 0.0
    %624 = vmatpush2.msra.mxu0 0.0
    %625 = vmatprep.subr.mxu0 0.0
    %626 = vmatpush2.msra.mxu0 0.0
    %627 = vmatprep.subr.mxu0 0.0
    %628 = vmatpush2.msra.mxu0 0.0
    %629 = vmatprep.subr.mxu0 0.0
    %630 = vmatpush2.msra.mxu0 0.0
    %631 = vmatprep.subr.mxu0 0.0
    %632 = vmatpush2.msra.mxu0 0.0
    %633 = vmatprep.subr.mxu0 0.0
    %634 = vmatpush2.msra.mxu0 0.0
    %635 = vmatprep.mubr.f32.mxu0 0.0
    %636 = vmatmul.mubr.f32.gmra.mxu0 %v569
    %v637 = vpop.f32.mrf.mxu0
    %v638 = vadd.f32 0.0, %v637
    %v639 = vpop.f32.mrf.mxu0
    %640 = vdwg.mxu0
    %v641 = vmul.f32 %v564, 0.00390625
    %v642 = vmul.f32 %v638, 0.00390625
    %v643 = vmul.f32 %v641, %v641
    %v644 = vsub.f32 %v642, %v643
    %v645 = vadd.f32 %v644, 1e-05
    %v646 = vrsqrt.pop %v645
    %v647 = vlaneseq
    %v648 = vshrl.u32 %v647, 7
    %v649 = vsub.s32 2, %v648
    %v650 = vrot.slane %v52, %v649
    %v651 = vmul.f32 %v646, %v650
    %v652 = vmul.f32 %v641, %v651
    %v653 = vlaneseq
    %v654 = vshrl.u32 %v653, 7
    %v655 = vsub.s32 3, %v654
    %v656 = vrot.slane %v52, %v655
    %v657 = vsub.f32 %v656, %v652
    %vm658 = vcmask 64512
    %v660 = vsel %vm658, %v651, 0
    %662 = vmatprep.subr.mxu0 0.0
    %663 = vmatpush1.msra.mxu0 0.0
    %664 = vmatprep.subr.mxu0 0.0
    %665 = vmatpush1.msra.mxu0 0.0
    %666 = vmatprep.subr.mxu0 0.0
    %667 = vmatpush1.msra.mxu0 0.0
    %668 = vmatprep.subr.mxu0 0.0
    %669 = vmatpush1.msra.mxu0 0.0
    %670 = vmatprep.subr.mxu0 0.0
    %671 = vmatpush1.msra.mxu0 0.0
    %672 = vmatprep.subr.mxu0 0.0
    %673 = vmatpush1.msra.mxu0 0.0
    %674 = vmatprep.subr.mxu0 0.0
    %675 = vmatpush1.msra.mxu0 0.0
    %676 = vmatprep.subr.mxu0 0.0
    %677 = vmatpush1.msra.mxu0 0.0
    %678 = vmatprep.subr.mxu0 0.0
    %679 = vmatpush1.msra.mxu0 0.0
    %680 = vmatprep.subr.mxu0 0.0
    %681 = vmatpush1.msra.mxu0 0.0
    %682 = vmatprep.subr.mxu0 0.0
    %683 = vmatpush1.msra.mxu0 0.0
    %684 = vmatprep.subr.mxu0 0.0
    %685 = vmatpush1.msra.mxu0 0.0
    %686 = vmatprep.subr.mxu0 0.0
    %687 = vmatpush1.msra.mxu0 0.0
    %688 = vmatprep.subr.mxu0 0.0
    %689 = vmatpush1.msra.mxu0 0.0
    %690 = vmatprep.subr.mxu0 0.0
    %691 = vmatpush1.msra.mxu0 0.0
    %692 = vmatprep.subr.mxu0 0.0
    %693 = vmatpush1.msra.mxu0 %v69
    %694 = vmatprep.subr.mxu0 0.0
    %695 = vmatpush2.msra.mxu0 0.0
    %696 = vmatprep.subr.mxu0 0.0
    %697 = vmatpush2.msra.mxu0 0.0
    %698 = vmatprep.subr.mxu0 0.0
    %699 = vmatpush2.msra.mxu0 0.0
    %700 = vmatprep.subr.mxu0 0.0
    %701 = vmatpush2.msra.mxu0 0.0
    %702 = vmatprep.subr.mxu0 0.0
    %703 = vmatpush2.msra.mxu0 0.0
    %704 = vmatprep.subr.mxu0 0.0
    %705 = vmatpush2.msra.mxu0 0.0
    %706 = vmatprep.subr.mxu0 0.0
    %707 = vmatpush2.msra.mxu0 0.0
    %708 = vmatprep.subr.mxu0 0.0
    %709 = vmatpush2.msra.mxu0 0.0
    %710 = vmatprep.subr.mxu0 0.0
    %711 = vmatpush2.msra.mxu0 0.0
    %712 = vmatprep.subr.mxu0 0.0
    %713 = vmatpush2.msra.mxu0 0.0
    %714 = vmatprep.subr.mxu0 0.0
    %715 = vmatpush2.msra.mxu0 0.0
    %716 = vmatprep.subr.mxu0 0.0
    %717 = vmatpush2.msra.mxu0 0.0
    %718 = vmatprep.subr.mxu0 0.0
    %719 = vmatpush2.msra.mxu0 0.0
    %720 = vmatprep.subr.mxu0 0.0
    %721 = vmatpush2.msra.mxu0 0.0
    %722 = vmatprep.subr.mxu0 0.0
    %723 = vmatpush2.msra.mxu0 0.0
    %724 = vmatprep.subr.mxu0 0.0
    %725 = vmatpush2.msra.mxu0 0.0
    %726 = vmatprep.mubr.f32.mxu0 0.0
    %727 = vmatmul.mubr.f32.gmra.mxu0 %v660
    %v728 = vpop.f32.mrf.mxu0
    %v729 = vadd.f32 0.0, %v728
    %v730 = vpop.f32.mrf.mxu0
    %731 = vdwg.mxu0
    %v733 = vsel %vm658, %v657, 0
    %735 = vmatprep.subr.mxu0 0.0
    %736 = vmatpush1.msra.mxu0 0.0
    %737 = vmatprep.subr.mxu0 0.0
    %738 = vmatpush1.msra.mxu0 0.0
    %739 = vmatprep.subr.mxu0 0.0
    %740 = vmatpush1.msra.mxu0 0.0
    %741 = vmatprep.subr.mxu0 0.0
    %742 = vmatpush1.msra.mxu0 0.0
    %743 = vmatprep.subr.mxu0 0.0
    %744 = vmatpush1.msra.mxu0 0.0
    %745 = vmatprep.subr.mxu0 0.0
    %746 = vmatpush1.msra.mxu0 0.0
    %747 = vmatprep.subr.mxu0 0.0
    %748 = vmatpush1.msra.mxu0 0.0
    %749 = vmatprep.subr.mxu0 0.0
    %750 = vmatpush1.msra.mxu0 0.0
    %751 = vmatprep.subr.mxu0 0.0
    %752 = vmatpush1.msra.mxu0 0.0
    %753 = vmatprep.subr.mxu0 0.0
    %754 = vmatpush1.msra.mxu0 0.0
    %755 = vmatprep.subr.mxu0 0.0
    %756 = vmatpush1.msra.mxu0 0.0
    %757 = vmatprep.subr.mxu0 0.0
    %758 = vmatpush1.msra.mxu0 0.0
    %759 = vmatprep.subr.mxu0 0.0
    %760 = vmatpush1.msra.mxu0 0.0
    %761 = vmatprep.subr.mxu0 0.0
    %762 = vmatpush1.msra.mxu0 0.0
    %763 = vmatprep.subr.mxu0 0.0
    %764 = vmatpush1.msra.mxu0 0.0
    %765 = vmatprep.subr.mxu0 0.0
    %766 = vmatpush1.msra.mxu0 %v69
    %767 = vmatprep.subr.mxu0 0.0
    %768 = vmatpush2.msra.mxu0 0.0
    %769 = vmatprep.subr.mxu0 0.0
    %770 = vmatpush2.msra.mxu0 0.0
    %771 = vmatprep.subr.mxu0 0.0
    %772 = vmatpush2.msra.mxu0 0.0
    %773 = vmatprep.subr.mxu0 0.0
    %774 = vmatpush2.msra.mxu0 0.0
    %775 = vmatprep.subr.mxu0 0.0
    %776 = vmatpush2.msra.mxu0 0.0
    %777 = vmatprep.subr.mxu0 0.0
    %778 = vmatpush2.msra.mxu0 0.0
    %779 = vmatprep.subr.mxu0 0.0
    %780 = vmatpush2.msra.mxu0 0.0
    %781 = vmatprep.subr.mxu0 0.0
    %782 = vmatpush2.msra.mxu0 0.0
    %783 = vmatprep.subr.mxu0 0.0
    %784 = vmatpush2.msra.mxu0 0.0
    %785 = vmatprep.subr.mxu0 0.0
    %786 = vmatpush2.msra.mxu0 0.0
    %787 = vmatprep.subr.mxu0 0.0
    %788 = vmatpush2.msra.mxu0 0.0
    %789 = vmatprep.subr.mxu0 0.0
    %790 = vmatpush2.msra.mxu0 0.0
    %791 = vmatprep.subr.mxu0 0.0
    %792 = vmatpush2.msra.mxu0 0.0
    %793 = vmatprep.subr.mxu0 0.0
    %794 = vmatpush2.msra.mxu0 0.0
    %795 = vmatprep.subr.mxu0 0.0
    %796 = vmatpush2.msra.mxu0 0.0
    %797 = vmatprep.subr.mxu0 0.0
    %798 = vmatpush2.msra.mxu0 0.0
    %799 = vmatprep.mubr.f32.mxu0 0.0
    %800 = vmatmul.mubr.f32.gmra.mxu0 %v733
    %v801 = vpop.f32.mrf.mxu0
    %v802 = vadd.f32 0.0, %v801
    %v803 = vpop.f32.mrf.mxu0
    %804 = vdwg.mxu0
    %v807 = vunpack.c.l.s4 1966171168
    %v808 = vunpack.c.0.s8 %v807
    %v809 = vlaneseq
    %v810 = vshrl.u32 %v809, 7
    %v811 = vsub.s32 %v808, %v810
    %v812 = vrot.slane %v729, %v811
    %v813 = vcombine.high %v812, %v812
    %v815 = vunpack.c.l.s4 1966171168
    %v816 = vunpack.c.0.s8 %v815
    %v817 = vlaneseq
    %v818 = vshrl.u32 %v817, 7
    %v819 = vsub.s32 %v816, %v818
    %v820 = vrot.slane %v812, %v819
    %v822 = vunpack.c.l.s4 1966171168
    %v823 = vunpack.c.0.s8 %v822
    %v824 = vlaneseq
    %v825 = vshrl.u32 %v824, 7
    %v826 = vsub.s32 %v823, %v825
    %v827 = vrot.slane %v813, %v826
    %v828 = vlaneseq
    %v829 = vshrl.u32 %v828, 7
    %v830 = vsub.s32 0, %v829
    %v831 = vrot.slane %v820, %v830
    %v832 = vlaneseq
    %v833 = vshrl.u32 %v832, 7
    %v834 = vsub.s32 0, %v833
    %v835 = vrot.slane %v827, %v834
    %v838 = vmul.f32 %v452, %v831
    %v839 = vmul.f32 %v454, %v831
    %v840 = vmul.f32 %v456, %v835
    %v841 = vmul.f32 %v458, %v835
    %v844 = vunpack.c.l.s4 1966171168
    %v845 = vunpack.c.0.s8 %v844
    %v846 = vlaneseq
    %v847 = vshrl.u32 %v846, 7
    %v848 = vsub.s32 %v845, %v847
    %v849 = vrot.slane %v802, %v848
    %v850 = vcombine.high %v849, %v849
    %v852 = vunpack.c.l.s4 1966171168
    %v853 = vunpack.c.0.s8 %v852
    %v854 = vlaneseq
    %v855 = vshrl.u32 %v854, 7
    %v856 = vsub.s32 %v853, %v855
    %v857 = vrot.slane %v849, %v856
    %v859 = vunpack.c.l.s4 1966171168
    %v860 = vunpack.c.0.s8 %v859
    %v861 = vlaneseq
    %v862 = vshrl.u32 %v861, 7
    %v863 = vsub.s32 %v860, %v862
    %v864 = vrot.slane %v850, %v863
    %v865 = vlaneseq
    %v866 = vshrl.u32 %v865, 7
    %v867 = vsub.s32 0, %v866
    %v868 = vrot.slane %v857, %v867
    %v869 = vlaneseq
    %v870 = vshrl.u32 %v869, 7
    %v871 = vsub.s32 0, %v870
    %v872 = vrot.slane %v864, %v871
    %v875 = vadd.f32 %v838, %v868
    %v876 = vadd.f32 %v839, %v868
    %v877 = vadd.f32 %v840, %v872
    %v878 = vadd.f32 %v841, %v872
    %v879 = vmax.f32 %v875, 0.0
    %v880 = vmax.f32 %v876, 0.0
    %v881 = vmax.f32 %v877, 0.0
    %v882 = vmax.f32 %v878, 0.0
    %887 = vrot.lane.b32.xlu0 %v879, 120
    %v888 = vpop.permute.xlu0 %887
    %889 = vrot.lane.b32.xlu0 %v880, 120
    %v890 = vpop.permute.xlu0 %889
    %891 = vrot.lane.b32.xlu0 %v881, 120
    %v892 = vpop.permute.xlu0 %891
    %893 = vrot.lane.b32.xlu0 %v882, 120
    %v894 = vpop.permute.xlu0 %893
    %899 = vrot.lane.b32.xlu0 %v879, 8
    %v900 = vpop.permute.xlu0 %899
    %901 = vrot.lane.b32.xlu0 %v880, 8
    %v902 = vpop.permute.xlu0 %901
    %903 = vrot.lane.b32.xlu0 %v881, 8
    %v904 = vpop.permute.xlu0 %903
    %905 = vrot.lane.b32.xlu0 %v882, 8
    %v906 = vpop.permute.xlu0 %905
    %911 = vrot.lane.b32.xlu0 %v879, 24
    %v912 = vpop.permute.xlu0 %911
    %913 = vrot.lane.b32.xlu0 %v880, 24
    %v914 = vpop.permute.xlu0 %913
    %915 = vrot.lane.b32.xlu0 %v881, 24
    %v916 = vpop.permute.xlu0 %915
    %917 = vrot.lane.b32.xlu0 %v882, 24
    %v918 = vpop.permute.xlu0 %917
    %v923 = vsel %vm658, %v888, %v900
    %v924 = vsel %vm658, %v890, %v902
    %v925 = vsel %vm658, %v892, %v904
    %v926 = vsel %vm658, %v894, %v906
    %v927 = vsel %vm658, %v900, %v912
    %v928 = vsel %vm658, %v902, %v914
    %v929 = vsel %vm658, %v904, %v916
    %v930 = vsel %vm658, %v906, %v918
    %v935 = vrot.slane %v923, 1
    %v936 = vrot.slane %v927, 1
    %v937 = vrot.slane %v925, 1
    %v938 = vrot.slane %v929, 1
    %vm947 = vcmask 1040384
    %v948 = vrot.slane %v923, 7
    %v949 = vrot.slane %v927, 7
    %v950 = vrot.slane %v924, 7
    %v951 = vsel %vm947, %v948, %v950
    %v952 = vrot.slane %v928, 7
    %v953 = vsel %vm947, %v949, %v952
    %v954 = vrot.slane %v925, 7
    %v955 = vrot.slane %v929, 7
    %v956 = vrot.slane %v926, 7
    %v957 = vsel %vm947, %v954, %v956
    %v958 = vrot.slane %v930, 7
    %v959 = vsel %vm947, %v955, %v958
    %v970 = vrot.slane %v924, 5
    %v971 = vrot.slane %v928, 5
    %v972 = vrot.slane %v926, 5
    %v973 = vrot.slane %v930, 5
    %v978 = vsel %vm947, %v935, %v948
    %v979 = vsel %vm947, %v936, %v949
    %v980 = vsel %vm947, %v937, %v954
    %v981 = vsel %vm947, %v938, %v955
    %v982 = vsel %vm947, %v950, %v970
    %v983 = vsel %vm947, %v952, %v971
    %v984 = vsel %vm947, %v956, %v972
    %v985 = vsel %vm947, %v958, %v973
    %v986 = vld [vmem:[#allocation5] sm:$0xff]
    %v987 = vld [vmem:[#allocation5 + $0x8] sm:$0xff]
    %v988 = vld [vmem:[#allocation5 + $0x10] sm:$0xff]
    %v989 = vld [vmem:[#allocation5 + $0x18] sm:$0xff]
    %v990 = vld [vmem:[#allocation5 + $0x20] sm:$0xff]
    %v991 = vld [vmem:[#allocation5 + $0x28] sm:$0xff]
    %v992 = vld [vmem:[#allocation5 + $0x30] sm:$0xff]
    %v993 = vld [vmem:[#allocation5 + $0x38] sm:$0xff]
    %v994 = vld [vmem:[#allocation5 + $0x40] sm:$0xff]
    %v995 = vld [vmem:[#allocation5 + $0x48] sm:$0xff]
    %v996 = vld [vmem:[#allocation5 + $0x50] sm:$0xff]
    %v997 = vld [vmem:[#allocation5 + $0x58] sm:$0xff]
    %v998 = vld [vmem:[#allocation5 + $0x60] sm:$0xff]
    %v999 = vld [vmem:[#allocation5 + $0x68] sm:$0xff]
    %v1000 = vld [vmem:[#allocation5 + $0x70] sm:$0xff]
    %v1001 = vld [vmem:[#allocation5 + $0x78] sm:$0xff]
    %v1002 = vld [vmem:[#allocation5 + $0x80] sm:$0xff]
    %v1003 = vld [vmem:[#allocation5 + $0x88] sm:$0xff]
    %v1012 = vrot.slane %v978, 1
    %v1013 = vrot.slane %v951, 1
    %v1014 = vsel %vm100, %v1012, %v1013
    %v1015 = vrot.slane %v979, 1
    %v1016 = vrot.slane %v953, 1
    %v1017 = vsel %vm100, %v1015, %v1016
    %v1018 = vrot.slane %v982, 1
    %v1019 = vsel %vm100, %v1013, %v1018
    %v1020 = vrot.slane %v983, 1
    %v1021 = vsel %vm100, %v1016, %v1020
    %v1022 = vrot.slane %v980, 1
    %v1023 = vrot.slane %v957, 1
    %v1024 = vsel %vm100, %v1022, %v1023
    %v1025 = vrot.slane %v981, 1
    %v1026 = vrot.slane %v959, 1
    %v1027 = vsel %vm100, %v1025, %v1026
    %v1028 = vrot.slane %v984, 1
    %v1029 = vsel %vm100, %v1023, %v1028
    %v1030 = vrot.slane %v985, 1
    %v1031 = vsel %vm100, %v1026, %v1030
    %s1036 = scalar_lea.vmem [#allocation5], 144
    %v1037 = vld [vmem:[%s1036] sm:$0xff]
    %v1038 = vld [vmem:[%s1036 + $0x8] sm:$0xff]
    %v1039 = vld [vmem:[%s1036 + $0x10] sm:$0xff]
    %v1040 = vld [vmem:[%s1036 + $0x18] sm:$0xff]
    %v1041 = vld [vmem:[%s1036 + $0x20] sm:$0xff]
    %v1042 = vld [vmem:[%s1036 + $0x28] sm:$0xff]
    %v1043 = vld [vmem:[%s1036 + $0x30] sm:$0xff]
    %v1044 = vld [vmem:[%s1036 + $0x38] sm:$0xff]
    %v1045 = vld [vmem:[%s1036 + $0x40] sm:$0xff]
    %v1046 = vld [vmem:[%s1036 + $0x48] sm:$0xff]
    %v1047 = vld [vmem:[%s1036 + $0x50] sm:$0xff]
    %v1048 = vld [vmem:[%s1036 + $0x58] sm:$0xff]
    %v1049 = vld [vmem:[%s1036 + $0x60] sm:$0xff]
    %v1050 = vld [vmem:[%s1036 + $0x68] sm:$0xff]
    %v1051 = vld [vmem:[%s1036 + $0x70] sm:$0xff]
    %v1052 = vld [vmem:[%s1036 + $0x78] sm:$0xff]
    %v1053 = vld [vmem:[%s1036 + $0x80] sm:$0xff]
    %v1054 = vld [vmem:[%s1036 + $0x88] sm:$0xff]
    %vm1055 = vcmask 130048
    %v1056 = vsel %vm1055, %v1017, 0
    %v1058 = vsel %vm1055, %v1021, 0
    %v1060 = vsel %vm1055, %v1027, 0
    %v1062 = vsel %vm1055, %v1031, 0
    %1064 = vmatprep.subr.mxu0 0.0
    %1065 = vmatpush1.msra.mxu0 %v1052
    %1066 = vmatprep.subr.mxu0 0.0
    %1067 = vmatpush1.msra.mxu0 %v1051
    %1068 = vmatprep.subr.mxu0 0.0
    %1069 = vmatpush1.msra.mxu0 %v1050
    %1070 = vmatprep.subr.mxu0 0.0
    %1071 = vmatpush1.msra.mxu0 %v1049
    %1072 = vmatprep.subr.mxu0 0.0
    %1073 = vmatpush1.msra.mxu0 %v1048
    %1074 = vmatprep.subr.mxu0 0.0
    %1075 = vmatpush1.msra.mxu0 %v1047
    %1076 = vmatprep.subr.mxu0 0.0
    %1077 = vmatpush1.msra.mxu0 %v1046
    %1078 = vmatprep.subr.mxu0 0.0
    %1079 = vmatpush1.msra.mxu0 %v1045
    %1080 = vmatprep.subr.mxu0 0.0
    %1081 = vmatpush1.msra.mxu0 %v1044
    %1082 = vmatprep.subr.mxu0 0.0
    %1083 = vmatpush1.msra.mxu0 %v1043
    %1084 = vmatprep.subr.mxu0 0.0
    %1085 = vmatpush1.msra.mxu0 %v1042
    %1086 = vmatprep.subr.mxu0 0.0
    %1087 = vmatpush1.msra.mxu0 %v1041
    %1088 = vmatprep.subr.mxu0 0.0
    %1089 = vmatpush1.msra.mxu0 %v1040
    %1090 = vmatprep.subr.mxu0 0.0
    %1091 = vmatpush1.msra.mxu0 %v1039
    %1092 = vmatprep.subr.mxu0 0.0
    %1093 = vmatpush1.msra.mxu0 %v1038
    %1094 = vmatprep.subr.mxu0 0.0
    %1095 = vmatpush1.msra.mxu0 %v1037
    %1096 = vmatprep.subr.mxu0 0.0
    %1097 = vmatpush2.msra.mxu0 0.0
    %1098 = vmatprep.subr.mxu0 0.0
    %1099 = vmatpush2.msra.mxu0 0.0
    %1100 = vmatprep.subr.mxu0 0.0
    %1101 = vmatpush2.msra.mxu0 0.0
    %1102 = vmatprep.subr.mxu0 0.0
    %1103 = vmatpush2.msra.mxu0 0.0
    %1104 = vmatprep.subr.mxu0 0.0
    %1105 = vmatpush2.msra.mxu0 0.0
    %1106 = vmatprep.subr.mxu0 0.0
    %1107 = vmatpush2.msra.mxu0 0.0
    %1108 = vmatprep.subr.mxu0 0.0
    %1109 = vmatpush2.msra.mxu0 0.0
    %1110 = vmatprep.subr.mxu0 0.0
    %1111 = vmatpush2.msra.mxu0 0.0
    %1112 = vmatprep.subr.mxu0 0.0
    %1113 = vmatpush2.msra.mxu0 0.0
    %1114 = vmatprep.subr.mxu0 0.0
    %1115 = vmatpush2.msra.mxu0 0.0
    %1116 = vmatprep.subr.mxu0 0.0
    %1117 = vmatpush2.msra.mxu0 0.0
    %1118 = vmatprep.subr.mxu0 0.0
    %1119 = vmatpush2.msra.mxu0 0.0
    %1120 = vmatprep.subr.mxu0 0.0
    %1121 = vmatpush2.msra.mxu0 0.0
    %1122 = vmatprep.subr.mxu0 0.0
    %1123 = vmatpush2.msra.mxu0 0.0
    %1124 = vmatprep.subr.mxu0 0.0
    %1125 = vmatpush2.msra.mxu0 %v1054
    %1126 = vmatprep.subr.mxu0 0.0
    %1127 = vmatpush2.msra.mxu0 %v1053
    %1128 = vmatprep.mubr.f32.mxu0 %v1056
    %1129 = vmatmul.mubr.f32.gmra.mxu0 %v1014
    %v1130 = vpop.f32.mrf.mxu0
    %v1131 = vadd.f32 0.0, %v1130
    %v1132 = vpop.f32.mrf.mxu0
    %1133 = vmatprep.mubr.f32.mxu0 %v1058
    %1134 = vmatmul.mubr.f32.gmra.mxu0 %v1019
    %v1135 = vpop.f32.mrf.mxu0
    %v1136 = vadd.f32 0.0, %v1135
    %v1137 = vpop.f32.mrf.mxu0
    %1138 = vmatprep.mubr.f32.mxu0 %v1060
    %1139 = vmatmul.mubr.f32.gmra.mxu0 %v1024
    %v1140 = vpop.f32.mrf.mxu0
    %v1141 = vadd.f32 0.0, %v1140
    %v1142 = vpop.f32.mrf.mxu0
    %1143 = vmatprep.mubr.f32.mxu0 %v1062
    %1144 = vmatmul.mubr.f32.gmra.mxu0 %v1029
    %v1145 = vpop.f32.mrf.mxu0
    %v1146 = vadd.f32 0.0, %v1145
    %v1147 = vpop.f32.mrf.mxu0
    %1148 = vdwg.mxu0
    %v1149 = vsel %vm1055, %v979, 0
    %v1151 = vsel %vm1055, %v953, 0
    %v1153 = vsel %vm1055, %v981, 0
    %v1155 = vsel %vm1055, %v959, 0
    %1157 = vmatprep.subr.mxu0 0.0
    %1158 = vmatpush1.msra.mxu0 %v1001
    %1159 = vmatprep.subr.mxu0 0.0
    %1160 = vmatpush1.msra.mxu0 %v1000
    %1161 = vmatprep.subr.mxu0 0.0
    %1162 = vmatpush1.msra.mxu0 %v999
    %1163 = vmatprep.subr.mxu0 0.0
    %1164 = vmatpush1.msra.mxu0 %v998
    %1165 = vmatprep.subr.mxu0 0.0
    %1166 = vmatpush1.msra.mxu0 %v997
    %1167 = vmatprep.subr.mxu0 0.0
    %1168 = vmatpush1.msra.mxu0 %v996
    %1169 = vmatprep.subr.mxu0 0.0
    %1170 = vmatpush1.msra.mxu0 %v995
    %1171 = vmatprep.subr.mxu0 0.0
    %1172 = vmatpush1.msra.mxu0 %v994
    %1173 = vmatprep.subr.mxu0 0.0
    %1174 = vmatpush1.msra.mxu0 %v993
    %1175 = vmatprep.subr.mxu0 0.0
    %1176 = vmatpush1.msra.mxu0 %v992
    %1177 = vmatprep.subr.mxu0 0.0
    %1178 = vmatpush1.msra.mxu0 %v991
    %1179 = vmatprep.subr.mxu0 0.0
    %1180 = vmatpush1.msra.mxu0 %v990
    %1181 = vmatprep.subr.mxu0 0.0
    %1182 = vmatpush1.msra.mxu0 %v989
    %1183 = vmatprep.subr.mxu0 0.0
    %1184 = vmatpush1.msra.mxu0 %v988
    %1185 = vmatprep.subr.mxu0 0.0
    %1186 = vmatpush1.msra.mxu0 %v987
    %1187 = vmatprep.subr.mxu0 0.0
    %1188 = vmatpush1.msra.mxu0 %v986
    %1189 = vmatprep.subr.mxu0 0.0
    %1190 = vmatpush2.msra.mxu0 0.0
    %1191 = vmatprep.subr.mxu0 0.0
    %1192 = vmatpush2.msra.mxu0 0.0
    %1193 = vmatprep.subr.mxu0 0.0
    %1194 = vmatpush2.msra.mxu0 0.0
    %1195 = vmatprep.subr.mxu0 0.0
    %1196 = vmatpush2.msra.mxu0 0.0
    %1197 = vmatprep.subr.mxu0 0.0
    %1198 = vmatpush2.msra.mxu0 0.0
    %1199 = vmatprep.subr.mxu0 0.0
    %1200 = vmatpush2.msra.mxu0 0.0
    %1201 = vmatprep.subr.mxu0 0.0
    %1202 = vmatpush2.msra.mxu0 0.0
    %1203 = vmatprep.subr.mxu0 0.0
    %1204 = vmatpush2.msra.mxu0 0.0
    %1205 = vmatprep.subr.mxu0 0.0
    %1206 = vmatpush2.msra.mxu0 0.0
    %1207 = vmatprep.subr.mxu0 0.0
    %1208 = vmatpush2.msra.mxu0 0.0
    %1209 = vmatprep.subr.mxu0 0.0
    %1210 = vmatpush2.msra.mxu0 0.0
    %1211 = vmatprep.subr.mxu0 0.0
    %1212 = vmatpush2.msra.mxu0 0.0
    %1213 = vmatprep.subr.mxu0 0.0
    %1214 = vmatpush2.msra.mxu0 0.0
    %1215 = vmatprep.subr.mxu0 0.0
    %1216 = vmatpush2.msra.mxu0 0.0
    %1217 = vmatprep.subr.mxu0 0.0
    %1218 = vmatpush2.msra.mxu0 %v1003
    %1219 = vmatprep.subr.mxu0 0.0
    %1220 = vmatpush2.msra.mxu0 %v1002
    %1221 = vmatprep.mubr.f32.mxu0 %v1149
    %1222 = vmatmul.mubr.f32.gmra.mxu0 %v978
    %v1223 = vpop.f32.mrf.mxu0
    %v1224 = vadd.f32 %v1131, %v1223
    %v1225 = vpop.f32.mrf.mxu0
    %1226 = vmatprep.mubr.f32.mxu0 %v1151
    %1227 = vmatmul.mubr.f32.gmra.mxu0 %v951
    %v1228 = vpop.f32.mrf.mxu0
    %v1229 = vadd.f32 %v1136, %v1228
    %v1230 = vpop.f32.mrf.mxu0
    %1231 = vmatprep.mubr.f32.mxu0 %v1153
    %1232 = vmatmul.mubr.f32.gmra.mxu0 %v980
    %v1233 = vpop.f32.mrf.mxu0
    %v1234 = vadd.f32 %v1141, %v1233
    %v1235 = vpop.f32.mrf.mxu0
    %1236 = vmatprep.mubr.f32.mxu0 %v1155
    %1237 = vmatmul.mubr.f32.gmra.mxu0 %v957
    %v1238 = vpop.f32.mrf.mxu0
    %v1239 = vadd.f32 %v1146, %v1238
    %v1240 = vpop.f32.mrf.mxu0
    %1241 = vdwg.mxu0
    %v1242 = vrot.slane %v978, 2
    %v1243 = vrot.slane %v951, 2
    %v1244 = vsel %vm325, %v1242, %v1243
    %v1245 = vrot.slane %v979, 2
    %v1246 = vrot.slane %v953, 2
    %v1247 = vsel %vm325, %v1245, %v1246
    %v1248 = vrot.slane %v982, 2
    %v1249 = vsel %vm325, %v1243, %v1248
    %v1250 = vrot.slane %v983, 2
    %v1251 = vsel %vm325, %v1246, %v1250
    %v1252 = vrot.slane %v980, 2
    %v1253 = vrot.slane %v957, 2
    %v1254 = vsel %vm325, %v1252, %v1253
    %v1255 = vrot.slane %v981, 2
    %v1256 = vrot.slane %v959, 2
    %v1257 = vsel %vm325, %v1255, %v1256
    %v1258 = vrot.slane %v984, 2
    %v1259 = vsel %vm325, %v1253, %v1258
    %v1260 = vrot.slane %v985, 2
    %v1261 = vsel %vm325, %v1256, %v1260
    %s1266 = scalar_lea.vmem [#allocation5], 288
    %v1267 = vld [vmem:[%s1266] sm:$0xff]
    %v1268 = vld [vmem:[%s1266 + $0x8] sm:$0xff]
    %v1269 = vld [vmem:[%s1266 + $0x10] sm:$0xff]
    %v1270 = vld [vmem:[%s1266 + $0x18] sm:$0xff]
    %v1271 = vld [vmem:[%s1266 + $0x20] sm:$0xff]
    %v1272 = vld [vmem:[%s1266 + $0x28] sm:$0xff]
    %v1273 = vld [vmem:[%s1266 + $0x30] sm:$0xff]
    %v1274 = vld [vmem:[%s1266 + $0x38] sm:$0xff]
    %v1275 = vld [vmem:[%s1266 + $0x40] sm:$0xff]
    %v1276 = vld [vmem:[%s1266 + $0x48] sm:$0xff]
    %v1277 = vld [vmem:[%s1266 + $0x50] sm:$0xff]
    %v1278 = vld [vmem:[%s1266 + $0x58] sm:$0xff]
    %v1279 = vld [vmem:[%s1266 + $0x60] sm:$0xff]
    %v1280 = vld [vmem:[%s1266 + $0x68] sm:$0xff]
    %v1281 = vld [vmem:[%s1266 + $0x70] sm:$0xff]
    %v1282 = vld [vmem:[%s1266 + $0x78] sm:$0xff]
    %v1283 = vld [vmem:[%s1266 + $0x80] sm:$0xff]
    %v1284 = vld [vmem:[%s1266 + $0x88] sm:$0xff]
    %v1285 = vsel %vm1055, %v1247, 0
    %v1287 = vsel %vm1055, %v1251, 0
    %v1289 = vsel %vm1055, %v1257, 0
    %v1291 = vsel %vm1055, %v1261, 0
    %1293 = vmatprep.subr.mxu0 0.0
    %1294 = vmatpush1.msra.mxu0 %v1282
    %1295 = vmatprep.subr.mxu0 0.0
    %1296 = vmatpush1.msra.mxu0 %v1281
    %1297 = vmatprep.subr.mxu0 0.0
    %1298 = vmatpush1.msra.mxu0 %v1280
    %1299 = vmatprep.subr.mxu0 0.0
    %1300 = vmatpush1.msra.mxu0 %v1279
    %1301 = vmatprep.subr.mxu0 0.0
    %1302 = vmatpush1.msra.mxu0 %v1278
    %1303 = vmatprep.subr.mxu0 0.0
    %1304 = vmatpush1.msra.mxu0 %v1277
    %1305 = vmatprep.subr.mxu0 0.0
    %1306 = vmatpush1.msra.mxu0 %v1276
    %1307 = vmatprep.subr.mxu0 0.0
    %1308 = vmatpush1.msra.mxu0 %v1275
    %1309 = vmatprep.subr.mxu0 0.0
    %1310 = vmatpush1.msra.mxu0 %v1274
    %1311 = vmatprep.subr.mxu0 0.0
    %1312 = vmatpush1.msra.mxu0 %v1273
    %1313 = vmatprep.subr.mxu0 0.0
    %1314 = vmatpush1.msra.mxu0 %v1272
    %1315 = vmatprep.subr.mxu0 0.0
    %1316 = vmatpush1.msra.mxu0 %v1271
    %1317 = vmatprep.subr.mxu0 0.0
    %1318 = vmatpush1.msra.mxu0 %v1270
    %1319 = vmatprep.subr.mxu0 0.0
    %1320 = vmatpush1.msra.mxu0 %v1269
    %1321 = vmatprep.subr.mxu0 0.0
    %1322 = vmatpush1.msra.mxu0 %v1268
    %1323 = vmatprep.subr.mxu0 0.0
    %1324 = vmatpush1.msra.mxu0 %v1267
    %1325 = vmatprep.subr.mxu0 0.0
    %1326 = vmatpush2.msra.mxu0 0.0
    %1327 = vmatprep.subr.mxu0 0.0
    %1328 = vmatpush2.msra.mxu0 0.0
    %1329 = vmatprep.subr.mxu0 0.0
    %1330 = vmatpush2.msra.mxu0 0.0
    %1331 = vmatprep.subr.mxu0 0.0
    %1332 = vmatpush2.msra.mxu0 0.0
    %1333 = vmatprep.subr.mxu0 0.0
    %1334 = vmatpush2.msra.mxu0 0.0
    %1335 = vmatprep.subr.mxu0 0.0
    %1336 = vmatpush2.msra.mxu0 0.0
    %1337 = vmatprep.subr.mxu0 0.0
    %1338 = vmatpush2.msra.mxu0 0.0
    %1339 = vmatprep.subr.mxu0 0.0
    %1340 = vmatpush2.msra.mxu0 0.0
    %1341 = vmatprep.subr.mxu0 0.0
    %1342 = vmatpush2.msra.mxu0 0.0
    %1343 = vmatprep.subr.mxu0 0.0
    %1344 = vmatpush2.msra.mxu0 0.0
    %1345 = vmatprep.subr.mxu0 0.0
    %1346 = vmatpush2.msra.mxu0 0.0
    %1347 = vmatprep.subr.mxu0 0.0
    %1348 = vmatpush2.msra.mxu0 0.0
    %1349 = vmatprep.subr.mxu0 0.0
    %1350 = vmatpush2.msra.mxu0 0.0
    %1351 = vmatprep.subr.mxu0 0.0
    %1352 = vmatpush2.msra.mxu0 0.0
    %1353 = vmatprep.subr.mxu0 0.0
    %1354 = vmatpush2.msra.mxu0 %v1284
    %1355 = vmatprep.subr.mxu0 0.0
    %1356 = vmatpush2.msra.mxu0 %v1283
    %1357 = vmatprep.mubr.f32.mxu0 %v1285
    %1358 = vmatmul.mubr.f32.gmra.mxu0 %v1244
    %v1359 = vpop.f32.mrf.mxu0
    %v1360 = vadd.f32 0.0, %v1359
    %v1361 = vpop.f32.mrf.mxu0
    %1362 = vmatprep.mubr.f32.mxu0 %v1287
    %1363 = vmatmul.mubr.f32.gmra.mxu0 %v1249
    %v1364 = vpop.f32.mrf.mxu0
    %v1365 = vadd.f32 0.0, %v1364
    %v1366 = vpop.f32.mrf.mxu0
    %1367 = vmatprep.mubr.f32.mxu0 %v1289
    %1368 = vmatmul.mubr.f32.gmra.mxu0 %v1254
    %v1369 = vpop.f32.mrf.mxu0
    %v1370 = vadd.f32 0.0, %v1369
    %v1371 = vpop.f32.mrf.mxu0
    %1372 = vmatprep.mubr.f32.mxu0 %v1291
    %1373 = vmatmul.mubr.f32.gmra.mxu0 %v1259
    %v1374 = vpop.f32.mrf.mxu0
    %v1375 = vadd.f32 0.0, %v1374
    %v1376 = vpop.f32.mrf.mxu0
    %1377 = vdwg.mxu0
    %v1378 = vadd.f32 %v1224, %v1360
    %v1379 = vadd.f32 %v1229, %v1365
    %v1380 = vadd.f32 %v1234, %v1370
    %v1381 = vadd.f32 %v1239, %v1375
    %v1382 = vadd.f32 %v1378, %v1379
    %v1383 = vrot.slane %v1382, 4
    %v1384 = vadd.f32 %v1382, %v1383
    %v1385 = vrot.slane %v1384, 2
    %v1386 = vadd.f32 %v1384, %v1385
    %v1387 = vrot.slane %v1386, 1
    %v1388 = vadd.f32 %v1386, %v1387
    %v1389 = vadd.f32 %v1380, %v1381
    %v1390 = vrot.slane %v1389, 4
    %v1391 = vadd.f32 %v1389, %v1390
    %v1392 = vrot.slane %v1391, 2
    %v1393 = vadd.f32 %v1391, %v1392
    %v1394 = vrot.slane %v1393, 1
    %v1395 = vadd.f32 %v1393, %v1394
    %v1396 = vmul.f32 %v1378, %v1378
    %v1397 = vmul.f32 %v1379, %v1379
    %v1398 = vmul.f32 %v1380, %v1380
    %v1399 = vmul.f32 %v1381, %v1381
    %v1400 = vadd.f32 %v1396, %v1397
    %v1401 = vrot.slane %v1400, 4
    %v1402 = vadd.f32 %v1400, %v1401
    %v1403 = vrot.slane %v1402, 2
    %v1404 = vadd.f32 %v1402, %v1403
    %v1405 = vrot.slane %v1404, 1
    %v1406 = vadd.f32 %v1404, %v1405
    %v1407 = vadd.f32 %v1398, %v1399
    %v1408 = vrot.slane %v1407, 4
    %v1409 = vadd.f32 %v1407, %v1408
    %v1410 = vrot.slane %v1409, 2
    %v1411 = vadd.f32 %v1409, %v1410
    %v1412 = vrot.slane %v1411, 1
    %v1413 = vadd.f32 %v1411, %v1412
    %v1416 = vsel %vm494, %v1395, %v1388
    %1418 = vmatprep.subr.mxu0 0.0
    %1419 = vmatpush1.msra.mxu0 %v68
    %1420 = vmatprep.subr.mxu0 0.0
    %1421 = vmatpush1.msra.mxu0 %v67
    %1422 = vmatprep.subr.mxu0 0.0
    %1423 = vmatpush1.msra.mxu0 %v66
    %1424 = vmatprep.subr.mxu0 0.0
    %1425 = vmatpush1.msra.mxu0 %v65
    %1426 = vmatprep.subr.mxu0 0.0
    %1427 = vmatpush1.msra.mxu0 %v64
    %1428 = vmatprep.subr.mxu0 0.0
    %1429 = vmatpush1.msra.mxu0 %v63
    %1430 = vmatprep.subr.mxu0 0.0
    %1431 = vmatpush1.msra.mxu0 %v62
    %1432 = vmatprep.subr.mxu0 0.0
    %1433 = vmatpush1.msra.mxu0 %v61
    %1434 = vmatprep.subr.mxu0 0.0
    %1435 = vmatpush1.msra.mxu0 %v60
    %1436 = vmatprep.subr.mxu0 0.0
    %1437 = vmatpush1.msra.mxu0 %v59
    %1438 = vmatprep.subr.mxu0 0.0
    %1439 = vmatpush1.msra.mxu0 %v58
    %1440 = vmatprep.subr.mxu0 0.0
    %1441 = vmatpush1.msra.mxu0 %v57
    %1442 = vmatprep.subr.mxu0 0.0
    %1443 = vmatpush1.msra.mxu0 %v56
    %1444 = vmatprep.subr.mxu0 0.0
    %1445 = vmatpush1.msra.mxu0 %v55
    %1446 = vmatprep.subr.mxu0 0.0
    %1447 = vmatpush1.msra.mxu0 %v54
    %1448 = vmatprep.subr.mxu0 0.0
    %1449 = vmatpush1.msra.mxu0 %v53
    %1450 = vmatprep.subr.mxu0 0.0
    %1451 = vmatpush2.msra.mxu0 0.0
    %1452 = vmatprep.subr.mxu0 0.0
    %1453 = vmatpush2.msra.mxu0 0.0
    %1454 = vmatprep.subr.mxu0 0.0
    %1455 = vmatpush2.msra.mxu0 0.0
    %1456 = vmatprep.subr.mxu0 0.0
    %1457 = vmatpush2.msra.mxu0 0.0
    %1458 = vmatprep.subr.mxu0 0.0
    %1459 = vmatpush2.msra.mxu0 0.0
    %1460 = vmatprep.subr.mxu0 0.0
    %1461 = vmatpush2.msra.mxu0 0.0
    %1462 = vmatprep.subr.mxu0 0.0
    %1463 = vmatpush2.msra.mxu0 0.0
    %1464 = vmatprep.subr.mxu0 0.0
    %1465 = vmatpush2.msra.mxu0 0.0
    %1466 = vmatprep.subr.mxu0 0.0
    %1467 = vmatpush2.msra.mxu0 0.0
    %1468 = vmatprep.subr.mxu0 0.0
    %1469 = vmatpush2.msra.mxu0 0.0
    %1470 = vmatprep.subr.mxu0 0.0
    %1471 = vmatpush2.msra.mxu0 0.0
    %1472 = vmatprep.subr.mxu0 0.0
    %1473 = vmatpush2.msra.mxu0 0.0
    %1474 = vmatprep.subr.mxu0 0.0
    %1475 = vmatpush2.msra.mxu0 0.0
    %1476 = vmatprep.subr.mxu0 0.0
    %1477 = vmatpush2.msra.mxu0 0.0
    %1478 = vmatprep.subr.mxu0 0.0
    %1479 = vmatpush2.msra.mxu0 0.0
    %1480 = vmatprep.subr.mxu0 0.0
    %1481 = vmatpush2.msra.mxu0 0.0
    %1482 = vmatprep.mubr.f32.mxu0 0.0
    %1483 = vmatmul.mubr.f32.gmra.mxu0 %v1416
    %v1484 = vpop.f32.mrf.mxu0
    %v1485 = vadd.f32 0.0, %v1484
    %v1486 = vpop.f32.mrf.mxu0
    %1487 = vdwg.mxu0
    %v1490 = vsel %vm494, %v1413, %v1406
    %1492 = vmatprep.subr.mxu0 0.0
    %1493 = vmatpush1.msra.mxu0 %v68
    %1494 = vmatprep.subr.mxu0 0.0
    %1495 = vmatpush1.msra.mxu0 %v67
    %1496 = vmatprep.subr.mxu0 0.0
    %1497 = vmatpush1.msra.mxu0 %v66
    %1498 = vmatprep.subr.mxu0 0.0
    %1499 = vmatpush1.msra.mxu0 %v65
    %1500 = vmatprep.subr.mxu0 0.0
    %1501 = vmatpush1.msra.mxu0 %v64
    %1502 = vmatprep.subr.mxu0 0.0
    %1503 = vmatpush1.msra.mxu0 %v63
    %1504 = vmatprep.subr.mxu0 0.0
    %1505 = vmatpush1.msra.mxu0 %v62
    %1506 = vmatprep.subr.mxu0 0.0
    %1507 = vmatpush1.msra.mxu0 %v61
    %1508 = vmatprep.subr.mxu0 0.0
    %1509 = vmatpush1.msra.mxu0 %v60
    %1510 = vmatprep.subr.mxu0 0.0
    %1511 = vmatpush1.msra.mxu0 %v59
    %1512 = vmatprep.subr.mxu0 0.0
    %1513 = vmatpush1.msra.mxu0 %v58
    %1514 = vmatprep.subr.mxu0 0.0
    %1515 = vmatpush1.msra.mxu0 %v57
    %1516 = vmatprep.subr.mxu0 0.0
    %1517 = vmatpush1.msra.mxu0 %v56
    %1518 = vmatprep.subr.mxu0 0.0
    %1519 = vmatpush1.msra.mxu0 %v55
    %1520 = vmatprep.subr.mxu0 0.0
    %1521 = vmatpush1.msra.mxu0 %v54
    %1522 = vmatprep.subr.mxu0 0.0
    %1523 = vmatpush1.msra.mxu0 %v53
    %1524 = vmatprep.subr.mxu0 0.0
    %1525 = vmatpush2.msra.mxu0 0.0
    %1526 = vmatprep.subr.mxu0 0.0
    %1527 = vmatpush2.msra.mxu0 0.0
    %1528 = vmatprep.subr.mxu0 0.0
    %1529 = vmatpush2.msra.mxu0 0.0
    %1530 = vmatprep.subr.mxu0 0.0
    %1531 = vmatpush2.msra.mxu0 0.0
    %1532 = vmatprep.subr.mxu0 0.0
    %1533 = vmatpush2.msra.mxu0 0.0
    %1534 = vmatprep.subr.mxu0 0.0
    %1535 = vmatpush2.msra.mxu0 0.0
    %1536 = vmatprep.subr.mxu0 0.0
    %1537 = vmatpush2.msra.mxu0 0.0
    %1538 = vmatprep.subr.mxu0 0.0
    %1539 = vmatpush2.msra.mxu0 0.0
    %1540 = vmatprep.subr.mxu0 0.0
    %1541 = vmatpush2.msra.mxu0 0.0
    %1542 = vmatprep.subr.mxu0 0.0
    %1543 = vmatpush2.msra.mxu0 0.0
    %1544 = vmatprep.subr.mxu0 0.0
    %1545 = vmatpush2.msra.mxu0 0.0
    %1546 = vmatprep.subr.mxu0 0.0
    %1547 = vmatpush2.msra.mxu0 0.0
    %1548 = vmatprep.subr.mxu0 0.0
    %1549 = vmatpush2.msra.mxu0 0.0
    %1550 = vmatprep.subr.mxu0 0.0
    %1551 = vmatpush2.msra.mxu0 0.0
    %1552 = vmatprep.subr.mxu0 0.0
    %1553 = vmatpush2.msra.mxu0 0.0
    %1554 = vmatprep.subr.mxu0 0.0
    %1555 = vmatpush2.msra.mxu0 0.0
    %1556 = vmatprep.mubr.f32.mxu0 0.0
    %1557 = vmatmul.mubr.f32.gmra.mxu0 %v1490
    %v1558 = vpop.f32.mrf.mxu0
    %v1559 = vadd.f32 0.0, %v1558
    %v1560 = vpop.f32.mrf.mxu0
    %1561 = vdwg.mxu0
    %v1562 = vmul.f32 %v1485, 0.00390625
    %v1563 = vmul.f32 %v1559, 0.00390625
    %v1564 = vmul.f32 %v1562, %v1562
    %v1565 = vsub.f32 %v1563, %v1564
    %v1566 = vadd.f32 %v1565, 1e-05
    %v1567 = vrsqrt.pop %v1566
    %v1568 = vlaneseq
    %v1569 = vshrl.u32 %v1568, 7
    %v1570 = vsub.s32 4, %v1569
    %v1571 = vrot.slane %v52, %v1570
    %v1572 = vmul.f32 %v1567, %v1571
    %v1573 = vmul.f32 %v1562, %v1572
    %v1574 = vlaneseq
    %v1575 = vshrl.u32 %v1574, 7
    %v1576 = vsub.s32 5, %v1575
    %v1577 = vrot.slane %v52, %v1576
    %v1578 = vsub.f32 %v1577, %v1573
    %v1580 = vsel %vm658, %v1572, 0
    %1582 = vmatprep.subr.mxu0 0.0
    %1583 = vmatpush1.msra.mxu0 0.0
    %1584 = vmatprep.subr.mxu0 0.0
    %1585 = vmatpush1.msra.mxu0 0.0
    %1586 = vmatprep.subr.mxu0 0.0
    %1587 = vmatpush1.msra.mxu0 0.0
    %1588 = vmatprep.subr.mxu0 0.0
    %1589 = vmatpush1.msra.mxu0 0.0
    %1590 = vmatprep.subr.mxu0 0.0
    %1591 = vmatpush1.msra.mxu0 0.0
    %1592 = vmatprep.subr.mxu0 0.0
    %1593 = vmatpush1.msra.mxu0 0.0
    %1594 = vmatprep.subr.mxu0 0.0
    %1595 = vmatpush1.msra.mxu0 0.0
    %1596 = vmatprep.subr.mxu0 0.0
    %1597 = vmatpush1.msra.mxu0 0.0
    %1598 = vmatprep.subr.mxu0 0.0
    %1599 = vmatpush1.msra.mxu0 0.0
    %1600 = vmatprep.subr.mxu0 0.0
    %1601 = vmatpush1.msra.mxu0 0.0
    %1602 = vmatprep.subr.mxu0 0.0
    %1603 = vmatpush1.msra.mxu0 0.0
    %1604 = vmatprep.subr.mxu0 0.0
    %1605 = vmatpush1.msra.mxu0 0.0
    %1606 = vmatprep.subr.mxu0 0.0
    %1607 = vmatpush1.msra.mxu0 0.0
    %1608 = vmatprep.subr.mxu0 0.0
    %1609 = vmatpush1.msra.mxu0 0.0
    %1610 = vmatprep.subr.mxu0 0.0
    %1611 = vmatpush1.msra.mxu0 0.0
    %1612 = vmatprep.subr.mxu0 0.0
    %1613 = vmatpush1.msra.mxu0 %v69
    %1614 = vmatprep.subr.mxu0 0.0
    %1615 = vmatpush2.msra.mxu0 0.0
    %1616 = vmatprep.subr.mxu0 0.0
    %1617 = vmatpush2.msra.mxu0 0.0
    %1618 = vmatprep.subr.mxu0 0.0
    %1619 = vmatpush2.msra.mxu0 0.0
    %1620 = vmatprep.subr.mxu0 0.0
    %1621 = vmatpush2.msra.mxu0 0.0
    %1622 = vmatprep.subr.mxu0 0.0
    %1623 = vmatpush2.msra.mxu0 0.0
    %1624 = vmatprep.subr.mxu0 0.0
    %1625 = vmatpush2.msra.mxu0 0.0
    %1626 = vmatprep.subr.mxu0 0.0
    %1627 = vmatpush2.msra.mxu0 0.0
    %1628 = vmatprep.subr.mxu0 0.0
    %1629 = vmatpush2.msra.mxu0 0.0
    %1630 = vmatprep.subr.mxu0 0.0
    %1631 = vmatpush2.msra.mxu0 0.0
    %1632 = vmatprep.subr.mxu0 0.0
    %1633 = vmatpush2.msra.mxu0 0.0
    %1634 = vmatprep.subr.mxu0 0.0
    %1635 = vmatpush2.msra.mxu0 0.0
    %1636 = vmatprep.subr.mxu0 0.0
    %1637 = vmatpush2.msra.mxu0 0.0
    %1638 = vmatprep.subr.mxu0 0.0
    %1639 = vmatpush2.msra.mxu0 0.0
    %1640 = vmatprep.subr.mxu0 0.0
    %1641 = vmatpush2.msra.mxu0 0.0
    %1642 = vmatprep.subr.mxu0 0.0
    %1643 = vmatpush2.msra.mxu0 0.0
    %1644 = vmatprep.subr.mxu0 0.0
    %1645 = vmatpush2.msra.mxu0 0.0
    %1646 = vmatprep.mubr.f32.mxu0 0.0
    %1647 = vmatmul.mubr.f32.gmra.mxu0 %v1580
    %v1648 = vpop.f32.mrf.mxu0
    %v1649 = vadd.f32 0.0, %v1648
    %v1650 = vpop.f32.mrf.mxu0
    %1651 = vdwg.mxu0
    %v1653 = vsel %vm658, %v1578, 0
    %1655 = vmatprep.subr.mxu0 0.0
    %1656 = vmatpush1.msra.mxu0 0.0
    %1657 = vmatprep.subr.mxu0 0.0
    %1658 = vmatpush1.msra.mxu0 0.0
    %1659 = vmatprep.subr.mxu0 0.0
    %1660 = vmatpush1.msra.mxu0 0.0
    %1661 = vmatprep.subr.mxu0 0.0
    %1662 = vmatpush1.msra.mxu0 0.0
    %1663 = vmatprep.subr.mxu0 0.0
    %1664 = vmatpush1.msra.mxu0 0.0
    %1665 = vmatprep.subr.mxu0 0.0
    %1666 = vmatpush1.msra.mxu0 0.0
    %1667 = vmatprep.subr.mxu0 0.0
    %1668 = vmatpush1.msra.mxu0 0.0
    %1669 = vmatprep.subr.mxu0 0.0
    %1670 = vmatpush1.msra.mxu0 0.0
    %1671 = vmatprep.subr.mxu0 0.0
    %1672 = vmatpush1.msra.mxu0 0.0
    %1673 = vmatprep.subr.mxu0 0.0
    %1674 = vmatpush1.msra.mxu0 0.0
    %1675 = vmatprep.subr.mxu0 0.0
    %1676 = vmatpush1.msra.mxu0 0.0
    %1677 = vmatprep.subr.mxu0 0.0
    %1678 = vmatpush1.msra.mxu0 0.0
    %1679 = vmatprep.subr.mxu0 0.0
    %1680 = vmatpush1.msra.mxu0 0.0
    %1681 = vmatprep.subr.mxu0 0.0
    %1682 = vmatpush1.msra.mxu0 0.0
    %1683 = vmatprep.subr.mxu0 0.0
    %1684 = vmatpush1.msra.mxu0 0.0
    %1685 = vmatprep.subr.mxu0 0.0
    %1686 = vmatpush1.msra.mxu0 %v69
    %1687 = vmatprep.subr.mxu0 0.0
    %1688 = vmatpush2.msra.mxu0 0.0
    %1689 = vmatprep.subr.mxu0 0.0
    %1690 = vmatpush2.msra.mxu0 0.0
    %1691 = vmatprep.subr.mxu0 0.0
    %1692 = vmatpush2.msra.mxu0 0.0
    %1693 = vmatprep.subr.mxu0 0.0
    %1694 = vmatpush2.msra.mxu0 0.0
    %1695 = vmatprep.subr.mxu0 0.0
    %1696 = vmatpush2.msra.mxu0 0.0
    %1697 = vmatprep.subr.mxu0 0.0
    %1698 = vmatpush2.msra.mxu0 0.0
    %1699 = vmatprep.subr.mxu0 0.0
    %1700 = vmatpush2.msra.mxu0 0.0
    %1701 = vmatprep.subr.mxu0 0.0
    %1702 = vmatpush2.msra.mxu0 0.0
    %1703 = vmatprep.subr.mxu0 0.0
    %1704 = vmatpush2.msra.mxu0 0.0
    %1705 = vmatprep.subr.mxu0 0.0
    %1706 = vmatpush2.msra.mxu0 0.0
    %1707 = vmatprep.subr.mxu0 0.0
    %1708 = vmatpush2.msra.mxu0 0.0
    %1709 = vmatprep.subr.mxu0 0.0
    %1710 = vmatpush2.msra.mxu0 0.0
    %1711 = vmatprep.subr.mxu0 0.0
    %1712 = vmatpush2.msra.mxu0 0.0
    %1713 = vmatprep.subr.mxu0 0.0
    %1714 = vmatpush2.msra.mxu0 0.0
    %1715 = vmatprep.subr.mxu0 0.0
    %1716 = vmatpush2.msra.mxu0 0.0
    %1717 = vmatprep.subr.mxu0 0.0
    %1718 = vmatpush2.msra.mxu0 0.0
    %1719 = vmatprep.mubr.f32.mxu0 0.0
    %1720 = vmatmul.mubr.f32.gmra.mxu0 %v1653
    %v1721 = vpop.f32.mrf.mxu0
    %v1722 = vadd.f32 0.0, %v1721
    %v1723 = vpop.f32.mrf.mxu0
    %1724 = vdwg.mxu0
    %v1727 = vunpack.c.l.s4 1966171168
    %v1728 = vunpack.c.0.s8 %v1727
    %v1729 = vlaneseq
    %v1730 = vshrl.u32 %v1729, 7
    %v1731 = vsub.s32 %v1728, %v1730
    %v1732 = vrot.slane %v1649, %v1731
    %v1733 = vcombine.high %v1732, %v1732
    %v1735 = vunpack.c.l.s4 1966171168
    %v1736 = vunpack.c.0.s8 %v1735
    %v1737 = vlaneseq
    %v1738 = vshrl.u32 %v1737, 7
    %v1739 = vsub.s32 %v1736, %v1738
    %v1740 = vrot.slane %v1732, %v1739
    %v1742 = vunpack.c.l.s4 1966171168
    %v1743 = vunpack.c.0.s8 %v1742
    %v1744 = vlaneseq
    %v1745 = vshrl.u32 %v1744, 7
    %v1746 = vsub.s32 %v1743, %v1745
    %v1747 = vrot.slane %v1733, %v1746
    %v1748 = vlaneseq
    %v1749 = vshrl.u32 %v1748, 7
    %v1750 = vsub.s32 0, %v1749
    %v1751 = vrot.slane %v1740, %v1750
    %v1752 = vlaneseq
    %v1753 = vshrl.u32 %v1752, 7
    %v1754 = vsub.s32 0, %v1753
    %v1755 = vrot.slane %v1747, %v1754
    %v1758 = vmul.f32 %v1378, %v1751
    %v1759 = vmul.f32 %v1379, %v1751
    %v1760 = vmul.f32 %v1380, %v1755
    %v1761 = vmul.f32 %v1381, %v1755
    %v1764 = vunpack.c.l.s4 1966171168
    %v1765 = vunpack.c.0.s8 %v1764
    %v1766 = vlaneseq
    %v1767 = vshrl.u32 %v1766, 7
    %v1768 = vsub.s32 %v1765, %v1767
    %v1769 = vrot.slane %v1722, %v1768
    %v1770 = vcombine.high %v1769, %v1769
    %v1772 = vunpack.c.l.s4 1966171168
    %v1773 = vunpack.c.0.s8 %v1772
    %v1774 = vlaneseq
    %v1775 = vshrl.u32 %v1774, 7
    %v1776 = vsub.s32 %v1773, %v1775
    %v1777 = vrot.slane %v1769, %v1776
    %v1779 = vunpack.c.l.s4 1966171168
    %v1780 = vunpack.c.0.s8 %v1779
    %v1781 = vlaneseq
    %v1782 = vshrl.u32 %v1781, 7
    %v1783 = vsub.s32 %v1780, %v1782
    %v1784 = vrot.slane %v1770, %v1783
    %v1785 = vlaneseq
    %v1786 = vshrl.u32 %v1785, 7
    %v1787 = vsub.s32 0, %v1786
    %v1788 = vrot.slane %v1777, %v1787
    %v1789 = vlaneseq
    %v1790 = vshrl.u32 %v1789, 7
    %v1791 = vsub.s32 0, %v1790
    %v1792 = vrot.slane %v1784, %v1791
    %v1795 = vadd.f32 %v1758, %v1788
    %v1796 = vadd.f32 %v1759, %v1788
    %v1797 = vadd.f32 %v1760, %v1792
    %v1798 = vadd.f32 %v1761, %v1792
    %v1799 = vadd.f32 %v453, %v455
    %v1800 = vrot.slane %v1799, 4
    %v1801 = vadd.f32 %v1799, %v1800
    %v1802 = vrot.slane %v1801, 2
    %v1803 = vadd.f32 %v1801, %v1802
    %v1804 = vrot.slane %v1803, 1
    %v1805 = vadd.f32 %v1803, %v1804
    %v1806 = vadd.f32 %v457, %v459
    %v1807 = vrot.slane %v1806, 4
    %v1808 = vadd.f32 %v1806, %v1807
    %v1809 = vrot.slane %v1808, 2
    %v1810 = vadd.f32 %v1808, %v1809
    %v1811 = vrot.slane %v1810, 1
    %v1812 = vadd.f32 %v1810, %v1811
    %v1813 = vmul.f32 %v453, %v453
    %v1814 = vmul.f32 %v455, %v455
    %v1815 = vmul.f32 %v457, %v457
    %v1816 = vmul.f32 %v459, %v459
    %v1817 = vadd.f32 %v1813, %v1814
    %v1818 = vrot.slane %v1817, 4
    %v1819 = vadd.f32 %v1817, %v1818
    %v1820 = vrot.slane %v1819, 2
    %v1821 = vadd.f32 %v1819, %v1820
    %v1822 = vrot.slane %v1821, 1
    %v1823 = vadd.f32 %v1821, %v1822
    %v1824 = vadd.f32 %v1815, %v1816
    %v1825 = vrot.slane %v1824, 4
    %v1826 = vadd.f32 %v1824, %v1825
    %v1827 = vrot.slane %v1826, 2
    %v1828 = vadd.f32 %v1826, %v1827
    %v1829 = vrot.slane %v1828, 1
    %v1830 = vadd.f32 %v1828, %v1829
    %v1833 = vsel %vm494, %v1812, %v1805
    %1835 = vmatprep.subr.mxu0 0.0
    %1836 = vmatpush1.msra.mxu0 %v68
    %1837 = vmatprep.subr.mxu0 0.0
    %1838 = vmatpush1.msra.mxu0 %v67
    %1839 = vmatprep.subr.mxu0 0.0
    %1840 = vmatpush1.msra.mxu0 %v66
    %1841 = vmatprep.subr.mxu0 0.0
    %1842 = vmatpush1.msra.mxu0 %v65
    %1843 = vmatprep.subr.mxu0 0.0
    %1844 = vmatpush1.msra.mxu0 %v64
    %1845 = vmatprep.subr.mxu0 0.0
    %1846 = vmatpush1.msra.mxu0 %v63
    %1847 = vmatprep.subr.mxu0 0.0
    %1848 = vmatpush1.msra.mxu0 %v62
    %1849 = vmatprep.subr.mxu0 0.0
    %1850 = vmatpush1.msra.mxu0 %v61
    %1851 = vmatprep.subr.mxu0 0.0
    %1852 = vmatpush1.msra.mxu0 %v60
    %1853 = vmatprep.subr.mxu0 0.0
    %1854 = vmatpush1.msra.mxu0 %v59
    %1855 = vmatprep.subr.mxu0 0.0
    %1856 = vmatpush1.msra.mxu0 %v58
    %1857 = vmatprep.subr.mxu0 0.0
    %1858 = vmatpush1.msra.mxu0 %v57
    %1859 = vmatprep.subr.mxu0 0.0
    %1860 = vmatpush1.msra.mxu0 %v56
    %1861 = vmatprep.subr.mxu0 0.0
    %1862 = vmatpush1.msra.mxu0 %v55
    %1863 = vmatprep.subr.mxu0 0.0
    %1864 = vmatpush1.msra.mxu0 %v54
    %1865 = vmatprep.subr.mxu0 0.0
    %1866 = vmatpush1.msra.mxu0 %v53
    %1867 = vmatprep.subr.mxu0 0.0
    %1868 = vmatpush2.msra.mxu0 0.0
    %1869 = vmatprep.subr.mxu0 0.0
    %1870 = vmatpush2.msra.mxu0 0.0
    %1871 = vmatprep.subr.mxu0 0.0
    %1872 = vmatpush2.msra.mxu0 0.0
    %1873 = vmatprep.subr.mxu0 0.0
    %1874 = vmatpush2.msra.mxu0 0.0
    %1875 = vmatprep.subr.mxu0 0.0
    %1876 = vmatpush2.msra.mxu0 0.0
    %1877 = vmatprep.subr.mxu0 0.0
    %1878 = vmatpush2.msra.mxu0 0.0
    %1879 = vmatprep.subr.mxu0 0.0
    %1880 = vmatpush2.msra.mxu0 0.0
    %1881 = vmatprep.subr.mxu0 0.0
    %1882 = vmatpush2.msra.mxu0 0.0
    %1883 = vmatprep.subr.mxu0 0.0
    %1884 = vmatpush2.msra.mxu0 0.0
    %1885 = vmatprep.subr.mxu0 0.0
    %1886 = vmatpush2.msra.mxu0 0.0
    %1887 = vmatprep.subr.mxu0 0.0
    %1888 = vmatpush2.msra.mxu0 0.0
    %1889 = vmatprep.subr.mxu0 0.0
    %1890 = vmatpush2.msra.mxu0 0.0
    %1891 = vmatprep.subr.mxu0 0.0
    %1892 = vmatpush2.msra.mxu0 0.0
    %1893 = vmatprep.subr.mxu0 0.0
    %1894 = vmatpush2.msra.mxu0 0.0
    %1895 = vmatprep.subr.mxu0 0.0
    %1896 = vmatpush2.msra.mxu0 0.0
    %1897 = vmatprep.subr.mxu0 0.0
    %1898 = vmatpush2.msra.mxu0 0.0
    %1899 = vmatprep.mubr.f32.mxu0 0.0
    %1900 = vmatmul.mubr.f32.gmra.mxu0 %v1833
    %v1901 = vpop.f32.mrf.mxu0
    %v1902 = vadd.f32 0.0, %v1901
    %v1903 = vpop.f32.mrf.mxu0
    %1904 = vdwg.mxu0
    %v1907 = vsel %vm494, %v1830, %v1823
    %1909 = vmatprep.subr.mxu0 0.0
    %1910 = vmatpush1.msra.mxu0 %v68
    %1911 = vmatprep.subr.mxu0 0.0
    %1912 = vmatpush1.msra.mxu0 %v67
    %1913 = vmatprep.subr.mxu0 0.0
    %1914 = vmatpush1.msra.mxu0 %v66
    %1915 = vmatprep.subr.mxu0 0.0
    %1916 = vmatpush1.msra.mxu0 %v65
    %1917 = vmatprep.subr.mxu0 0.0
    %1918 = vmatpush1.msra.mxu0 %v64
    %1919 = vmatprep.subr.mxu0 0.0
    %1920 = vmatpush1.msra.mxu0 %v63
    %1921 = vmatprep.subr.mxu0 0.0
    %1922 = vmatpush1.msra.mxu0 %v62
    %1923 = vmatprep.subr.mxu0 0.0
    %1924 = vmatpush1.msra.mxu0 %v61
    %1925 = vmatprep.subr.mxu0 0.0
    %1926 = vmatpush1.msra.mxu0 %v60
    %1927 = vmatprep.subr.mxu0 0.0
    %1928 = vmatpush1.msra.mxu0 %v59
    %1929 = vmatprep.subr.mxu0 0.0
    %1930 = vmatpush1.msra.mxu0 %v58
    %1931 = vmatprep.subr.mxu0 0.0
    %1932 = vmatpush1.msra.mxu0 %v57
    %1933 = vmatprep.subr.mxu0 0.0
    %1934 = vmatpush1.msra.mxu0 %v56
    %1935 = vmatprep.subr.mxu0 0.0
    %1936 = vmatpush1.msra.mxu0 %v55
    %1937 = vmatprep.subr.mxu0 0.0
    %1938 = vmatpush1.msra.mxu0 %v54
    %1939 = vmatprep.subr.mxu0 0.0
    %1940 = vmatpush1.msra.mxu0 %v53
    %1941 = vmatprep.subr.mxu0 0.0
    %1942 = vmatpush2.msra.mxu0 0.0
    %1943 = vmatprep.subr.mxu0 0.0
    %1944 = vmatpush2.msra.mxu0 0.0
    %1945 = vmatprep.subr.mxu0 0.0
    %1946 = vmatpush2.msra.mxu0 0.0
    %1947 = vmatprep.subr.mxu0 0.0
    %1948 = vmatpush2.msra.mxu0 0.0
    %1949 = vmatprep.subr.mxu0 0.0
    %1950 = vmatpush2.msra.mxu0 0.0
    %1951 = vmatprep.subr.mxu0 0.0
    %1952 = vmatpush2.msra.mxu0 0.0
    %1953 = vmatprep.subr.mxu0 0.0
    %1954 = vmatpush2.msra.mxu0 0.0
    %1955 = vmatprep.subr.mxu0 0.0
    %1956 = vmatpush2.msra.mxu0 0.0
    %1957 = vmatprep.subr.mxu0 0.0
    %1958 = vmatpush2.msra.mxu0 0.0
    %1959 = vmatprep.subr.mxu0 0.0
    %1960 = vmatpush2.msra.mxu0 0.0
    %1961 = vmatprep.subr.mxu0 0.0
    %1962 = vmatpush2.msra.mxu0 0.0
    %1963 = vmatprep.subr.mxu0 0.0
    %1964 = vmatpush2.msra.mxu0 0.0
    %1965 = vmatprep.subr.mxu0 0.0
    %1966 = vmatpush2.msra.mxu0 0.0
    %1967 = vmatprep.subr.mxu0 0.0
    %1968 = vmatpush2.msra.mxu0 0.0
    %1969 = vmatprep.subr.mxu0 0.0
    %1970 = vmatpush2.msra.mxu0 0.0
    %1971 = vmatprep.subr.mxu0 0.0
    %1972 = vmatpush2.msra.mxu0 0.0
    %1973 = vmatprep.mubr.f32.mxu0 0.0
    %1974 = vmatmul.mubr.f32.gmra.mxu0 %v1907
    %v1975 = vpop.f32.mrf.mxu0
    %v1976 = vadd.f32 0.0, %v1975
    %v1977 = vpop.f32.mrf.mxu0
    %1978 = vdwg.mxu0
    %v1979 = vmul.f32 %v1902, 0.00390625
    %v1980 = vmul.f32 %v1976, 0.00390625
    %v1981 = vmul.f32 %v1979, %v1979
    %v1982 = vsub.f32 %v1980, %v1981
    %v1983 = vadd.f32 %v1982, 1e-05
    %v1984 = vrsqrt.pop %v1983
    %v1985 = vlaneseq
    %v1986 = vshrl.u32 %v1985, 7
    %v1987 = vsub.s32 0, %v1986
    %v1988 = vrot.slane %v52, %v1987
    %v1989 = vmul.f32 %v1984, %v1988
    %v1990 = vmul.f32 %v1979, %v1989
    %v1991 = vlaneseq
    %v1992 = vshrl.u32 %v1991, 7
    %v1993 = vsub.s32 1, %v1992
    %v1994 = vrot.slane %v52, %v1993
    %v1995 = vsub.f32 %v1994, %v1990
    %v1997 = vsel %vm658, %v1989, 0
    %1999 = vmatprep.subr.mxu0 0.0
    %2000 = vmatpush1.msra.mxu0 0.0
    %2001 = vmatprep.subr.mxu0 0.0
    %2002 = vmatpush1.msra.mxu0 0.0
    %2003 = vmatprep.subr.mxu0 0.0
    %2004 = vmatpush1.msra.mxu0 0.0
    %2005 = vmatprep.subr.mxu0 0.0
    %2006 = vmatpush1.msra.mxu0 0.0
    %2007 = vmatprep.subr.mxu0 0.0
    %2008 = vmatpush1.msra.mxu0 0.0
    %2009 = vmatprep.subr.mxu0 0.0
    %2010 = vmatpush1.msra.mxu0 0.0
    %2011 = vmatprep.subr.mxu0 0.0
    %2012 = vmatpush1.msra.mxu0 0.0
    %2013 = vmatprep.subr.mxu0 0.0
    %2014 = vmatpush1.msra.mxu0 0.0
    %2015 = vmatprep.subr.mxu0 0.0
    %2016 = vmatpush1.msra.mxu0 0.0
    %2017 = vmatprep.subr.mxu0 0.0
    %2018 = vmatpush1.msra.mxu0 0.0
    %2019 = vmatprep.subr.mxu0 0.0
    %2020 = vmatpush1.msra.mxu0 0.0
    %2021 = vmatprep.subr.mxu0 0.0
    %2022 = vmatpush1.msra.mxu0 0.0
    %2023 = vmatprep.subr.mxu0 0.0
    %2024 = vmatpush1.msra.mxu0 0.0
    %2025 = vmatprep.subr.mxu0 0.0
    %2026 = vmatpush1.msra.mxu0 0.0
    %2027 = vmatprep.subr.mxu0 0.0
    %2028 = vmatpush1.msra.mxu0 0.0
    %2029 = vmatprep.subr.mxu0 0.0
    %2030 = vmatpush1.msra.mxu0 %v69
    %2031 = vmatprep.subr.mxu0 0.0
    %2032 = vmatpush2.msra.mxu0 0.0
    %2033 = vmatprep.subr.mxu0 0.0
    %2034 = vmatpush2.msra.mxu0 0.0
    %2035 = vmatprep.subr.mxu0 0.0
    %2036 = vmatpush2.msra.mxu0 0.0
    %2037 = vmatprep.subr.mxu0 0.0
    %2038 = vmatpush2.msra.mxu0 0.0
    %2039 = vmatprep.subr.mxu0 0.0
    %2040 = vmatpush2.msra.mxu0 0.0
    %2041 = vmatprep.subr.mxu0 0.0
    %2042 = vmatpush2.msra.mxu0 0.0
    %2043 = vmatprep.subr.mxu0 0.0
    %2044 = vmatpush2.msra.mxu0 0.0
    %2045 = vmatprep.subr.mxu0 0.0
    %2046 = vmatpush2.msra.mxu0 0.0
    %2047 = vmatprep.subr.mxu0 0.0
    %2048 = vmatpush2.msra.mxu0 0.0
    %2049 = vmatprep.subr.mxu0 0.0
    %2050 = vmatpush2.msra.mxu0 0.0
    %2051 = vmatprep.subr.mxu0 0.0
    %2052 = vmatpush2.msra.mxu0 0.0
    %2053 = vmatprep.subr.mxu0 0.0
    %2054 = vmatpush2.msra.mxu0 0.0
    %2055 = vmatprep.subr.mxu0 0.0
    %2056 = vmatpush2.msra.mxu0 0.0
    %2057 = vmatprep.subr.mxu0 0.0
    %2058 = vmatpush2.msra.mxu0 0.0
    %2059 = vmatprep.subr.mxu0 0.0
    %2060 = vmatpush2.msra.mxu0 0.0
    %2061 = vmatprep.subr.mxu0 0.0
    %2062 = vmatpush2.msra.mxu0 0.0
    %2063 = vmatprep.mubr.f32.mxu0 0.0
    %2064 = vmatmul.mubr.f32.gmra.mxu0 %v1997
    %v2065 = vpop.f32.mrf.mxu0
    %v2066 = vadd.f32 0.0, %v2065
    %v2067 = vpop.f32.mrf.mxu0
    %2068 = vdwg.mxu0
    %v2070 = vsel %vm658, %v1995, 0
    %2072 = vmatprep.subr.mxu0 0.0
    %2073 = vmatpush1.msra.mxu0 0.0
    %2074 = vmatprep.subr.mxu0 0.0
    %2075 = vmatpush1.msra.mxu0 0.0
    %2076 = vmatprep.subr.mxu0 0.0
    %2077 = vmatpush1.msra.mxu0 0.0
    %2078 = vmatprep.subr.mxu0 0.0
    %2079 = vmatpush1.msra.mxu0 0.0
    %2080 = vmatprep.subr.mxu0 0.0
    %2081 = vmatpush1.msra.mxu0 0.0
    %2082 = vmatprep.subr.mxu0 0.0
    %2083 = vmatpush1.msra.mxu0 0.0
    %2084 = vmatprep.subr.mxu0 0.0
    %2085 = vmatpush1.msra.mxu0 0.0
    %2086 = vmatprep.subr.mxu0 0.0
    %2087 = vmatpush1.msra.mxu0 0.0
    %2088 = vmatprep.subr.mxu0 0.0
    %2089 = vmatpush1.msra.mxu0 0.0
    %2090 = vmatprep.subr.mxu0 0.0
    %2091 = vmatpush1.msra.mxu0 0.0
    %2092 = vmatprep.subr.mxu0 0.0
    %2093 = vmatpush1.msra.mxu0 0.0
    %2094 = vmatprep.subr.mxu0 0.0
    %2095 = vmatpush1.msra.mxu0 0.0
    %2096 = vmatprep.subr.mxu0 0.0
    %2097 = vmatpush1.msra.mxu0 0.0
    %2098 = vmatprep.subr.mxu0 0.0
    %2099 = vmatpush1.msra.mxu0 0.0
    %2100 = vmatprep.subr.mxu0 0.0
    %2101 = vmatpush1.msra.mxu0 0.0
    %2102 = vmatprep.subr.mxu0 0.0
    %2103 = vmatpush1.msra.mxu0 %v69
    %2104 = vmatprep.subr.mxu0 0.0
    %2105 = vmatpush2.msra.mxu0 0.0
    %2106 = vmatprep.subr.mxu0 0.0
    %2107 = vmatpush2.msra.mxu0 0.0
    %2108 = vmatprep.subr.mxu0 0.0
    %2109 = vmatpush2.msra.mxu0 0.0
    %2110 = vmatprep.subr.mxu0 0.0
    %2111 = vmatpush2.msra.mxu0 0.0
    %2112 = vmatprep.subr.mxu0 0.0
    %2113 = vmatpush2.msra.mxu0 0.0
    %2114 = vmatprep.subr.mxu0 0.0
    %2115 = vmatpush2.msra.mxu0 0.0
    %2116 = vmatprep.subr.mxu0 0.0
    %2117 = vmatpush2.msra.mxu0 0.0
    %2118 = vmatprep.subr.mxu0 0.0
    %2119 = vmatpush2.msra.mxu0 0.0
    %2120 = vmatprep.subr.mxu0 0.0
    %2121 = vmatpush2.msra.mxu0 0.0
    %2122 = vmatprep.subr.mxu0 0.0
    %2123 = vmatpush2.msra.mxu0 0.0
    %2124 = vmatprep.subr.mxu0 0.0
    %2125 = vmatpush2.msra.mxu0 0.0
    %2126 = vmatprep.subr.mxu0 0.0
    %2127 = vmatpush2.msra.mxu0 0.0
    %2128 = vmatprep.subr.mxu0 0.0
    %2129 = vmatpush2.msra.mxu0 0.0
    %2130 = vmatprep.subr.mxu0 0.0
    %2131 = vmatpush2.msra.mxu0 0.0
    %2132 = vmatprep.subr.mxu0 0.0
    %2133 = vmatpush2.msra.mxu0 0.0
    %2134 = vmatprep.subr.mxu0 0.0
    %2135 = vmatpush2.msra.mxu0 0.0
    %2136 = vmatprep.mubr.f32.mxu0 0.0
    %2137 = vmatmul.mubr.f32.gmra.mxu0 %v2070
    %v2138 = vpop.f32.mrf.mxu0
    %v2139 = vadd.f32 0.0, %v2138
    %v2140 = vpop.f32.mrf.mxu0
    %2141 = vdwg.mxu0
    %v2144 = vunpack.c.l.s4 1966171168
    %v2145 = vunpack.c.0.s8 %v2144
    %v2146 = vlaneseq
    %v2147 = vshrl.u32 %v2146, 7
    %v2148 = vsub.s32 %v2145, %v2147
    %v2149 = vrot.slane %v2066, %v2148
    %v2150 = vcombine.high %v2149, %v2149
    %v2152 = vunpack.c.l.s4 1966171168
    %v2153 = vunpack.c.0.s8 %v2152
    %v2154 = vlaneseq
    %v2155 = vshrl.u32 %v2154, 7
    %v2156 = vsub.s32 %v2153, %v2155
    %v2157 = vrot.slane %v2149, %v2156
    %v2159 = vunpack.c.l.s4 1966171168
    %v2160 = vunpack.c.0.s8 %v2159
    %v2161 = vlaneseq
    %v2162 = vshrl.u32 %v2161, 7
    %v2163 = vsub.s32 %v2160, %v2162
    %v2164 = vrot.slane %v2150, %v2163
    %v2165 = vlaneseq
    %v2166 = vshrl.u32 %v2165, 7
    %v2167 = vsub.s32 0, %v2166
    %v2168 = vrot.slane %v2157, %v2167
    %v2169 = vlaneseq
    %v2170 = vshrl.u32 %v2169, 7
    %v2171 = vsub.s32 0, %v2170
    %v2172 = vrot.slane %v2164, %v2171
    %v2175 = vmul.f32 %v453, %v2168
    %v2176 = vmul.f32 %v455, %v2168
    %v2177 = vmul.f32 %v457, %v2172
    %v2178 = vmul.f32 %v459, %v2172
    %v2181 = vunpack.c.l.s4 1966171168
    %v2182 = vunpack.c.0.s8 %v2181
    %v2183 = vlaneseq
    %v2184 = vshrl.u32 %v2183, 7
    %v2185 = vsub.s32 %v2182, %v2184
    %v2186 = vrot.slane %v2139, %v2185
    %v2187 = vcombine.high %v2186, %v2186
    %v2189 = vunpack.c.l.s4 1966171168
    %v2190 = vunpack.c.0.s8 %v2189
    %v2191 = vlaneseq
    %v2192 = vshrl.u32 %v2191, 7
    %v2193 = vsub.s32 %v2190, %v2192
    %v2194 = vrot.slane %v2186, %v2193
    %v2196 = vunpack.c.l.s4 1966171168
    %v2197 = vunpack.c.0.s8 %v2196
    %v2198 = vlaneseq
    %v2199 = vshrl.u32 %v2198, 7
    %v2200 = vsub.s32 %v2197, %v2199
    %v2201 = vrot.slane %v2187, %v2200
    %v2202 = vlaneseq
    %v2203 = vshrl.u32 %v2202, 7
    %v2204 = vsub.s32 0, %v2203
    %v2205 = vrot.slane %v2194, %v2204
    %v2206 = vlaneseq
    %v2207 = vshrl.u32 %v2206, 7
    %v2208 = vsub.s32 0, %v2207
    %v2209 = vrot.slane %v2201, %v2208
    %v2212 = vadd.f32 %v2175, %v2205
    %v2213 = vadd.f32 %v2176, %v2205
    %v2214 = vadd.f32 %v2177, %v2209
    %v2215 = vadd.f32 %v2178, %v2209
    %v2216 = vadd.f32 %v1795, %v2212
    %v2217 = vadd.f32 %v1796, %v2213
    %v2218 = vadd.f32 %v1797, %v2214
    %v2219 = vadd.f32 %v1798, %v2215
    %v2220 = vmax.f32 %v2216, 0.0
    %v2221 = vmax.f32 %v2217, 0.0
    %v2222 = vmax.f32 %v2218, 0.0
    %v2223 = vmax.f32 %v2219, 0.0
    %2224 = vst [vmem:[#allocation7] sm:$0xff] %v2220
    %2225 = vst [vmem:[#allocation7 + $0x8] sm:$0xff] %v2221
    %2226 = vst [vmem:[#allocation7 + $0x10] sm:$0xff] %v2222
    %2227 = vst [vmem:[#allocation7 + $0x18] sm:$0xff] %v2223
    // Predicated region
    $region34: #{tpu_custom_call.1} parent=1 // pred_check
      _
    $region35: #{tpu_custom_call.1} parent=1 // pred_check_branch
      %2229 = sbr.rel (0) target = $region37
    $region36: #{tpu_custom_call.1} parent=1 // pred_region
      %s2231 = ssub.s32 512, 512
      %2232 = vsyncadd [#allocation4], %s2231
      %s2233 = sshll.u32 [#allocation7], 4
      %s2234 = int_to_ptr.vmem [resolvable:$true] %s2233
      %2239 = dma.vmem_to_hbm [thread:$0]  %s2234, 512, %s6, [#allocation4], 128, 128, 8
    $region37: #{tpu_custom_call.1} parent=1 // pred_fallthru
      _
    // Predicated region
    $region38: #{tpu_custom_call.1} parent=1 // pred_check
      _
    $region39: #{tpu_custom_call.1} parent=1 // pred_check_branch
      %2241 = sbr.rel (0) target = $region41
    $region40: #{tpu_custom_call.1} parent=1 // pred_region
      %2242 = dma.done [#allocation4], 512
    $region41: #{tpu_custom_call.1} parent=1 // pred_fallthru
      _
    %2243 = vsyncpa [#allocation3], 1
    %2244 = vsyncpa [#allocation6], 1
    %2245 = vsyncpa [#allocation4], 1

</llo_original>
